<compile_context>
chip_gen: v6e
topology: v6e:2x2x1
jax: 0.10.0
libtpu: 0.0.40
codegen_flags: <defaults>
</compile_context>

<pallas_src>
import math
import functools

import jax
import jax.numpy as jnp
from jax import lax
from jax.experimental import pallas as pl
from jax.experimental.pallas import tpu as pltpu

EPS = 1e-8        # AdaptiveTemporalConv.eps (reference adds it to n_i * n_j)
LN_EPS = 1e-5     # torch.nn.LayerNorm default eps


def _round_up(a, m):
    return ((a + m - 1) // m) * m


def _vmem_limit_bytes():
    # v5e scoped default is only 16 MiB -> raise it; stay around half the physical
    # capacity so v7x (64 MiB) is safe while v6e/v5e (128 MiB) get bigger tiles.
    try:
        cap = int(pltpu.get_tpu_info().vmem_capacity_bytes)
    except Exception:
        cap = 64 * 1024 * 1024
    return int(min(max(cap // 2, 32 * 1024 * 1024), 100 * 1024 * 1024))


# ----------------------------------------------------------------------------
# Kernel 1: cosine-similarity scores + banded mask + softmax + right-mass sum
# ----------------------------------------------------------------------------
def _rscore_kernel(x_ref, o_ref, *, bt, t, window):
    W = window
    M = bt * t
    xv = x_ref[...].astype(jnp.float32)                      # (bt, t, D)

    # Row-normalize before the Gram so the (., t, t) denominator outer product and
    # divide disappear (perf review).  eps placement differs infinitesimally from
    # the reference's (n_i*n_j + 1e-8); only matters for near-zero-norm rows.
    inv = lax.rsqrt(jnp.sum(xv * xv, axis=-1, keepdims=True) + 1e-12)
    xn = xv * inv
    xn2 = xn[0] if bt == 1 else xn.reshape(M, xn.shape[-1])  # layout-free (t % 8 == 0)

    # Flattened Gram: one (M, D) x (D, M) MXU matmul per step instead of bt tiny
    # batched ones (perf review).  f32 accumulate so W*r_score truncation is stable.
    g = lax.dot_general(xn2, xn2, (((1,), (1,)), ((), ())),
                        preferred_element_type=jnp.float32)  # (M, M), symmetric

    # Masks built once at (M, M); axis 0 is the softmax/summation index j, axis 1
    # the query row i, so every reduction is a sublane reduction and the result is
    # already a lane-dense (1, M) vector (no relayout before the store).
    ji = lax.broadcasted_iota(jnp.int32, (M, M), 0)
    ii = lax.broadcasted_iota(jnp.int32, (M, M), 1)
    d = ji - ii
    band = (d <= W) & (d >= -(W - 1)) & (d != 0)        # non_local_mask(t, 2W)
    if bt > 1:
        band = band & ((ji // t) == (ii // t))           # kill cross-batch blocks
    rmask = band & (d >= 1)                              # right half (get_rl_mask)

    s = jnp.where(band, g, -jnp.inf)
    # Clamp the max so a fully-masked row (degenerate W/t combos where the PyTorch
    # reference itself produces NaN) yields r_score = 0 instead of NaN.
    m = jnp.maximum(jnp.max(s, axis=0, keepdims=True), -1e30)
    e = jnp.exp(s - m)
    num = jnp.sum(jnp.where(rmask, e, 0.0), axis=0, keepdims=True)
    den = jnp.maximum(jnp.sum(e, axis=0, keepdims=True), 1e-30)
    o_ref[0] = num / den                                  # (1, M), lane-dense


def _pick_bt(bs, t, D):
    """Batch rows per rscore grid step.  Honest working-set estimate (double
    buffered x block + f32/normalized copies + ~8 (M,M) temporaries), M capped near
    one MXU tile, and >= 2 grid steps whenever bs >= 2 (v7x has 2 TensorCores)."""
    best = 1
    for cand in range(1, bs + 1):
        if bs % cand:
            continue
        if cand > 1 and t % 8:
            continue                  # (bt,t,D)->(bt*t,D) merge must stay layout-free
        M = cand * t
        if cand > 1 and M > 256:
            continue                  # keep the flattened Gram near one 256x256 tile
        work = 4 * 4 * cand * t * D + 8 * 4 * M * M
        if work > 16 * 1024 * 1024:
            continue
        if bs >= 2 and bs // cand < 2:
            continue                  # leave both v7x cores something to do
        best = cand
    return best


def _rscore_pallas(x, window_size):
    bs, t, D = x.shape
    Bt = _pick_bt(bs, t, D)
    M = Bt * t
    # TODO(synk): for t >> 2*window_size, compute only the 2W banded diagonals
    # (O(t*W*D)) plus a query-row grid axis instead of the full Gram.
    kernel = functools.partial(_rscore_kernel, bt=Bt, t=t, window=window_size)
    out = pl.pallas_call(
        kernel,
        out_shape=jax.ShapeDtypeStruct((bs // Bt, 1, M), jnp.float32),
        grid=(bs // Bt,),
        in_specs=[pl.BlockSpec((Bt, t, D), lambda i: (i, 0, 0))],
        out_specs=pl.BlockSpec((1, 1, M), lambda i: (i, 0, 0)),
        compiler_params=pltpu.CompilerParams(
            dimension_semantics=("parallel",),
            vmem_limit_bytes=_vmem_limit_bytes()),
    )(x)
    return out.reshape(bs, t)


# ----------------------------------------------------------------------------
# Kernel 2: fused window-gather + rel-pos-emb add + TemporalConv
#   (depthwise conv1d k=3 -> LN -> ReLU, x2 -> masked max over time)
# ----------------------------------------------------------------------------
def _tcn_kernel(starts_ref,                       # scalar prefetch (SMEM): slab starts
                x_ref, bounds_ref, pos_ref, prm_ref,
                o_ref, win_ref, *, t, tq, window, lp, cb_min):
    W = window
    b = pl.program_id(0)
    qt = pl.program_id(1)
    row0 = qt * tq                                # first time index handled this step
    base = b * t + row0                           # flat row index into starts

    # Gather: contiguous length-lp slab of x plus its relative-position-embedding
    # rows (small static table), straight into VMEM scratch.  The (bs*t, span, D)
    # "new_feature" tensor of the reference never touches HBM.
    for q in range(tq):                           # tq is small & static -> full unroll
        st = starts_ref[base + q]
        vidx = st - (row0 + q) + (W - cb_min)     # pos-table row, derived in-kernel
        win_ref[q] = (x_ref[0, pl.ds(st, lp), :].astype(jnp.float32)
                      + pos_ref[vidx])

    prm = prm_ref[...].astype(jnp.float32)        # (12, D), loaded once
    w1, b1, g1, be1 = prm[0:3], prm[3:4], prm[4:5], prm[5:6]
    w2, b2, g2, be2 = prm[6:9], prm[9:10], prm[10:11], prm[11:12]

    def dwconv(v, w, bias):                       # depthwise valid conv, k = 3
        Lv = v.shape[1]
        return (v[:, 0:Lv - 2, :] * w[0:1][None]
                + v[:, 1:Lv - 1, :] * w[1:2][None]
                + v[:, 2:Lv, :] * w[2:3][None]
                + bias[None])

    def layernorm(v, g, be):                      # LayerNorm over the feature dim
        mu = jnp.mean(v, axis=-1, keepdims=True)
        var = jnp.mean((v - mu) ** 2, axis=-1, keepdims=True)
        return (v - mu) * lax.rsqrt(var + LN_EPS) * g[None] + be[None]

    y = win_ref[...]                              # (tq, lp,   D) f32
    y = jnp.maximum(layernorm(dwconv(y, w1, b1), g1, be1), 0.0)   # (tq, lp-2, D)
    y = jnp.maximum(layernorm(dwconv(y, w2, b2), g2, be2), 0.0)   # (tq, lp-4, D)

    # Only conv2 outputs whose receptive field lies entirely inside the true
    # (dynamic-length) window are real; everything else is static-slab left padding
    # and is masked out of the AdaptiveMaxPool1d(1).
    bv = bounds_ref[0]                            # (tq, 1, 2) int32
    lo = bv[:, :, 0:1]
    hi = bv[:, :, 1:2]
    j = lax.broadcasted_iota(jnp.int32, (tq, lp - 4, 1), 1)
    valid = (j >= lo) & (j <= hi)
    o_ref[0] = jnp.max(jnp.where(valid, y, -jnp.inf), axis=1).astype(o_ref.dtype)


def _pick_tq(t, lp, D):
    """Query rows per fused-TCN grid step: as many as a ~4 MiB scratch allows
    (amortizes the ~0.35us per-step overhead), capped so the gather loop stays a
    sane full unroll, and a multiple of 8 (or == t) for aligned blocks."""
    cap = max(1, (4 * 1024 * 1024) // (lp * D * 4))
    cap = min(cap, 64, t)
    for cand in range(cap, 0, -1):
        if t % cand == 0 and (cand % 8 == 0 or cand == t):
            return cand
    for cand in range(cap, 0, -1):
        if t % cand == 0:
            return cand
    return t


def _tcn_fused_pallas(x, starts, bounds, pos_tbl, prm, *, lp, window, cb_min):
    bs, t, D = x.shape
    n_tbl = pos_tbl.shape[0]
    TQ = _pick_tq(t, lp, D)
    kernel = functools.partial(_tcn_kernel, t=t, tq=TQ, window=window,
                               lp=lp, cb_min=cb_min)
    return pl.pallas_call(
        kernel,
        out_shape=jax.ShapeDtypeStruct((bs, t, D), x.dtype),
        grid_spec=pltpu.PrefetchScalarGridSpec(
            num_scalar_prefetch=1,                # per-row slab starts -> SMEM
            grid=(bs, t // TQ),
            in_specs=[
                # full per-batch x row set, resident across the qt axis
                pl.BlockSpec((1, t, D), lambda b, q, s: (b, 0, 0)),
                # per-row [lo, hi] valid conv2-output bounds (tiny int32 block)
                pl.BlockSpec((1, TQ, 1, 2), lambda b, q, s: (b, q, 0, 0)),
                # static relative-position-embedding table, resident
                pl.BlockSpec((n_tbl, lp, D), lambda b, q, s: (0, 0, 0)),
                # all conv/LN parameters packed into one resident (12, D) slab
                pl.BlockSpec((12, D), lambda b, q, s: (0, 0)),
            ],
            out_specs=pl.BlockSpec((1, TQ, D), lambda b, q, s: (b, q, 0)),
            scratch_shapes=[pltpu.VMEM((TQ, lp, D), jnp.float32)],
        ),
        compiler_params=pltpu.CompilerParams(
            dimension_semantics=("parallel", "parallel"),
            vmem_limit_bytes=_vmem_limit_bytes()),
    )(starts, x, bounds, pos_tbl, prm)


# ----------------------------------------------------------------------------
# Full forward (fully traceable: no device->host sync, no shape-dependent retrace)
# ----------------------------------------------------------------------------
def adaptive_temporal_conv(x, params, window_size):
    bs, t, D = x.shape
    W = window_size

    # --- Kernel 1: right-attention-mass score per (batch, time) --------------
    r_score = _rscore_pallas(x, W)                         # (bs, t) f32 in [0, 1]
    r_span = (W * r_score).astype(jnp.int32)               # trunc == torch .long()
    ar = jnp.arange(t, dtype=jnp.int32)
    r_max = jnp.clip(ar[None, :] + r_span, 0, t)
    l_min = jnp.clip(r_max - W + 1, 0, t)
    # min_span stays a *traced* scalar (perf review: no sync / no per-value
    # recompile).  The reference's masked topk+sort always selects exactly the
    # contiguous slice x[b, end-min_span+1 : end+1] with end = min(r_max, t-1)
    # (independent of tie-breaking), so no sort/gather of scattered ids is needed.
    min_span = jnp.min(r_max - l_min)
    end = jnp.minimum(r_max, t - 1)                        # inclusive window end

    # Static padded slab length (multiple of 8 sublanes, >= any possible min_span).
    lp = min(_round_up(max(W - 1, 1), 8), t)
    if lp < 5:
        raise ValueError("window_size / t too small: need >= 5 window positions for "
                         "two valid k=3 convs (same constraint as the reference)")
    start_load = jnp.clip(end - (lp - 1), 0, t - lp).astype(jnp.int32)  # slab start
    end_off = end - start_load                             # slab index of window end
    lo = (end_off - min_span + 1).astype(jnp.int32)        # first valid conv2 output
    hi = (end_off - 4).astype(jnp.int32)                   # last  valid conv2 output
    # TODO(synk): if min_span < 5 (the reference itself would raise) the valid mask
    # is empty and the corresponding outputs become -inf instead of an exception.
    bounds = jnp.stack([lo, hi], axis=-1)[:, :, None, :]   # (bs, t, 1, 2) int32

    # Relative-position rows of a length-lp slab depend only on cb = start - i + W;
    # precompute the small static (n_tbl, lp, D) table once (clamp matches reference).
    cb_min = W - lp + 1
    cb_max = max(2 * W - lp + 1, W)
    n_tbl = cb_max - cb_min + 1
    pos_ids = jnp.clip(cb_min + jnp.arange(n_tbl)[:, None] + jnp.arange(lp)[None, :],
                       0, 2 * W - 1)
    pos_tbl = params["emb"][pos_ids].astype(jnp.float32)   # (n_tbl, lp, D)

    # Pack the 8 tiny conv/LN parameter tensors into one (12, D) slab: one DMA
    # stream instead of eight sublane-padded, double-buffered ones (perf review).
    prm = jnp.concatenate(
        [params["w1"], params["b1"], params["g1"], params["be1"],
         params["w2"], params["b2"], params["g2"], params["be2"]], axis=0
    ).astype(jnp.float32)                                   # (12, D)

    return _tcn_fused_pallas(x, start_load.reshape(-1), bounds, pos_tbl, prm,
                             lp=lp, window=W, cb_min=cb_min)


# ----------------------------------------------------------------------------
# Deterministic synthetic parameter init (shapes from the PyTorch __init__)
# ----------------------------------------------------------------------------
def init_params(key, feat_dim, window_size):
    D = feat_dim
    ks = jax.random.split(key, 9)
    scale = 1.0 / math.sqrt(3.0)
    return {
        # nn.Embedding(2*window_size, feat_dim)
        "emb": 0.02 * jax.random.normal(ks[0], (2 * window_size, D), jnp.float32),
        # conv1: Conv1d(D, D, k=3, groups=D) weight [D,1,3] stored as (3, D), bias (1, D)
        "w1": jax.random.uniform(ks[1], (3, D), jnp.float32, -scale, scale),
        "b1": jax.random.uniform(ks[2], (1, D), jnp.float32, -scale, scale),
        # ln1 gamma/beta
        "g1": 1.0 + 0.1 * jax.random.normal(ks[3], (1, D), jnp.float32),
        "be1": 0.1 * jax.random.normal(ks[4], (1, D), jnp.float32),
        # conv2
        "w2": jax.random.uniform(ks[5], (3, D), jnp.float32, -scale, scale),
        "b2": jax.random.uniform(ks[6], (1, D), jnp.float32, -scale, scale),
        # ln2 gamma/beta
        "g2": 1.0 + 0.1 * jax.random.normal(ks[7], (1, D), jnp.float32),
        "be2": 0.1 * jax.random.normal(ks[8], (1, D), jnp.float32),
    }


if __name__ == "__main__":
    key = jax.random.PRNGKey(0)
    kx, kp = jax.random.split(key)

    # Small shapes consistent with the module; D=128 keeps the feature (lane) axis
    # dense so the TCN output stores are unmasked full-lane vst.
    bs, t, D, W = 2, 16, 128, 8
    x = jax.random.normal(kx, (bs, t, D), jnp.float32)
    params = init_params(kp, D, W)

    fwd = jax.jit(functools.partial(adaptive_temporal_conv, window_size=W))
    out = jax.block_until_ready(fwd(x, params))

    assert out.shape == (bs, t, D)
    assert bool(jnp.all(jnp.isfinite(out)))
    print("KERNEL_OK")
</pallas_src>

<mosaic_0001>
module attributes {stable_mosaic.version = 11 : i64} {
  func.func @_rscore_kernel(%arg0: i32, %arg1: memref<1x16x128xf32, #tpu.memory_space<vmem>>, %arg2: memref<1x1x16xf32, #tpu.memory_space<vmem>>) attributes {dimension_semantics = [#tpu.dimension_semantics<parallel>], iteration_bounds = array<i64: 2>, scalar_prefetch = 0 : i64, scratch_operands = 0 : i64, tpu.core_type = #tpu.core_type<tc>, window_params = [{transform_indices = @transform_0, window_bounds = array<i64: 1, 16, 128>}, {transform_indices = @transform_1, window_bounds = array<i64: 1, 1, 16>}]} {
    %c0 = arith.constant 0 : index
    %c0_0 = arith.constant 0 : index
    %c0_1 = arith.constant 0 : index
    %0 = vector.load %arg1[%c0, %c0_0, %c0_1] : memref<1x16x128xf32, #tpu.memory_space<vmem>>, vector<1x16x128xf32>
    %1 = arith.mulf %0, %0 : vector<1x16x128xf32>
    %cst = arith.constant dense<0.000000e+00> : vector<1x16xf32>
    %2 = vector.multi_reduction <add>, %1, %cst [2] : vector<1x16x128xf32> to vector<1x16xf32>
    %3 = vector.shape_cast %2 : vector<1x16xf32> to vector<1x16x1xf32>
    %cst_2 = arith.constant 9.99999996E-13 : f32
    %4 = vector.broadcast %cst_2 : f32 to vector<1x16x1xf32>
    %5 = arith.addf %3, %4 : vector<1x16x1xf32>
    %6 = math.rsqrt %5 : vector<1x16x1xf32>
    %7 = vector.broadcast %6 : vector<1x16x1xf32> to vector<1x16x128xf32>
    %8 = arith.mulf %0, %7 : vector<1x16x128xf32>
    %9 = vector.shape_cast %8 : vector<1x16x128xf32> to vector<16x128xf32>
    %cst_3 = arith.constant dense<0.000000e+00> : vector<16x16xf32>
    %10 = tpu.matmul %9, %9, %cst_3 {dimension_numbers = #tpu.dot_dimension_numbers<[1], [1], [0], [0], [0, 0, 1, 0], [], []>} : vector<16x128xf32>, vector<16x128xf32>, vector<16x16xf32> -> vector<16x16xf32>
    %11 = tpu.iota {dimensions = array<i32: 0>} : vector<16x16xi32>
    %12 = tpu.iota {dimensions = array<i32: 1>} : vector<16x16xi32>
    %13 = arith.subi %11, %12 : vector<16x16xi32>
    %c8_i32 = arith.constant 8 : i32
    %14 = vector.broadcast %c8_i32 : i32 to vector<16x16xi32>
    %15 = arith.cmpi sle, %13, %14 : vector<16x16xi32>
    %c-7_i32 = arith.constant -7 : i32
    %16 = vector.broadcast %c-7_i32 : i32 to vector<16x16xi32>
    %17 = arith.cmpi sge, %13, %16 : vector<16x16xi32>
    %18 = arith.andi %15, %17 : vector<16x16xi1>
    %c0_i32 = arith.constant 0 : i32
    %19 = vector.broadcast %c0_i32 : i32 to vector<16x16xi32>
    %20 = arith.cmpi ne, %13, %19 : vector<16x16xi32>
    %21 = arith.andi %18, %20 : vector<16x16xi1>
    %c1_i32 = arith.constant 1 : i32
    %22 = vector.broadcast %c1_i32 : i32 to vector<16x16xi32>
    %23 = arith.cmpi sge, %13, %22 : vector<16x16xi32>
    %24 = arith.andi %21, %23 : vector<16x16xi1>
    %cst_4 = arith.constant 0xFF800000 : f32
    %25 = vector.broadcast %cst_4 : f32 to vector<16x16xf32>
    %26 = arith.select %21, %10, %25 : vector<16x16xi1>, vector<16x16xf32>
    %cst_5 = arith.constant dense<0xFF800000> : vector<16xf32>
    %27 = vector.multi_reduction <maximumf>, %26, %cst_5 [0] : vector<16x16xf32> to vector<16xf32>
    %28 = vector.shape_cast %27 : vector<16xf32> to vector<1x16xf32>
    %cst_6 = arith.constant -1.000000e+30 : f32
    %29 = vector.broadcast %cst_6 : f32 to vector<1x16xf32>
    %30 = arith.maximumf %28, %29 : vector<1x16xf32>
    %31 = vector.broadcast %30 : vector<1x16xf32> to vector<16x16xf32>
    %32 = arith.subf %26, %31 : vector<16x16xf32>
    %33 = math.exp %32 : vector<16x16xf32>
    %cst_7 = arith.constant 0.000000e+00 : f32
    %34 = vector.broadcast %cst_7 : f32 to vector<16x16xf32>
    %35 = arith.select %24, %33, %34 : vector<16x16xi1>, vector<16x16xf32>
    %cst_8 = arith.constant dense<0.000000e+00> : vector<16xf32>
    %36 = vector.multi_reduction <add>, %35, %cst_8 [0] : vector<16x16xf32> to vector<16xf32>
    %37 = vector.shape_cast %36 : vector<16xf32> to vector<1x16xf32>
    %cst_9 = arith.constant dense<0.000000e+00> : vector<16xf32>
    %38 = vector.multi_reduction <add>, %33, %cst_9 [0] : vector<16x16xf32> to vector<16xf32>
    %39 = vector.shape_cast %38 : vector<16xf32> to vector<1x16xf32>
    %cst_10 = arith.constant 1.000000e-30 : f32
    %40 = vector.broadcast %cst_10 : f32 to vector<1x16xf32>
    %41 = arith.maximumf %39, %40 : vector<1x16xf32>
    %42 = arith.divf %37, %41 : vector<1x16xf32>
    %c0_11 = arith.constant 0 : index
    %c0_12 = arith.constant 0 : index
    %c0_13 = arith.constant 0 : index
    %43 = vector.load %arg2[%c0_11, %c0_12, %c0_13] : memref<1x1x16xf32, #tpu.memory_space<vmem>>, vector<1x1x16xf32>
    %44 = vector.shape_cast %43 : vector<1x1x16xf32> to vector<1x16xf32>
    %45 = vector.shape_cast %42 : vector<1x16xf32> to vector<1x1x16xf32>
    tpu.vector_store %arg2[%c0_11, %c0_12, %c0_13], %45 {strides = array<i32>} : memref<1x1x16xf32, #tpu.memory_space<vmem>>, vector<1x1x16xf32>,
    return
  }
  func.func @transform_0(%arg0: i32) -> (i32, i32, i32) {
    %c0_i32 = arith.constant 0 : i32
    %c0_i32_0 = arith.constant 0 : i32
    %c0_i32_1 = arith.constant 0 : i32
    return %arg0, %c0_i32, %c0_i32_0 : i32, i32, i32
  }
  func.func @transform_1(%arg0: i32) -> (i32, i32, i32) {
    %c0_i32 = arith.constant 0 : i32
    %c0_i32_0 = arith.constant 0 : i32
    %c0_i32_1 = arith.constant 0 : i32
    return %arg0, %c0_i32, %c0_i32_0 : i32, i32, i32
  }
}

module attributes {stable_mosaic.version = 11 : i64} {
  func.func @_tcn_kernel(%arg0: i32, %arg1: i32, %arg2: memref<32xi32, #tpu.memory_space<smem>>, %arg3: memref<1x16x128xf32, #tpu.memory_space<vmem>>, %arg4: memref<1x16x1x2xi32, #tpu.memory_space<vmem>>, %arg5: memref<9x8x128xf32, #tpu.memory_space<vmem>>, %arg6: memref<12x128xf32, #tpu.memory_space<vmem>>, %arg7: memref<1x16x128xf32, #tpu.memory_space<vmem>>, %arg8: memref<16x8x128xf32, #tpu.memory_space<vmem>>) attributes {dimension_semantics = [#tpu.dimension_semantics<parallel>, #tpu.dimension_semantics<parallel>], iteration_bounds = array<i64: 2, 1>, scalar_prefetch = 1 : i64, scratch_operands = 1 : i64, tpu.core_type = #tpu.core_type<tc>, window_params = [{transform_indices = @transform_0, window_bounds = array<i64: 1, 16, 128>}, {transform_indices = @transform_1, window_bounds = array<i64: 1, 16, 1, 2>}, {pipeline_mode = #tpu.pipeline_mode<synchronous>, transform_indices = @transform_2, window_bounds = array<i64: 9, 8, 128>}, {pipeline_mode = #tpu.pipeline_mode<synchronous>, transform_indices = @transform_3, window_bounds = array<i64: 12, 128>}, {transform_indices = @transform_4, window_bounds = array<i64: 1, 16, 128>}]} {
    %c16_i32 = arith.constant 16 : i32
    %0 = arith.muli %arg1, %c16_i32 : i32
    %c16_i32_0 = arith.constant 16 : i32
    %1 = arith.muli %arg0, %c16_i32_0 : i32
    %2 = arith.addi %1, %0 : i32
    %c0_i32 = arith.constant 0 : i32
    %3 = arith.addi %2, %c0_i32 : i32
    %4 = arith.index_cast %3 : i32 to index
    %5 = memref.load %arg2[%4] : memref<32xi32, #tpu.memory_space<smem>>
    %c0_i32_1 = arith.constant 0 : i32
    %6 = arith.addi %0, %c0_i32_1 : i32
    %7 = arith.subi %5, %6 : i32
    %c7_i32 = arith.constant 7 : i32
    %8 = arith.addi %7, %c7_i32 : i32
    %c0 = arith.constant 0 : index
    %9 = arith.index_cast %5 : i32 to index
    %c0_2 = arith.constant 0 : index
    %10 = vector.load %arg3[%c0, %9, %c0_2] : memref<1x16x128xf32, #tpu.memory_space<vmem>>, vector<1x8x128xf32>
    %11 = vector.shape_cast %10 : vector<1x8x128xf32> to vector<8x128xf32>
    %12 = arith.index_cast %8 : i32 to index
    %c0_3 = arith.constant 0 : index
    %c0_4 = arith.constant 0 : index
    %13 = vector.load %arg5[%12, %c0_3, %c0_4] : memref<9x8x128xf32, #tpu.memory_space<vmem>>, vector<1x8x128xf32>
    %14 = vector.shape_cast %13 : vector<1x8x128xf32> to vector<8x128xf32>
    %15 = arith.addf %11, %14 : vector<8x128xf32>
    %c0_5 = arith.constant 0 : index
    %c0_6 = arith.constant 0 : index
    %c0_7 = arith.constant 0 : index
    %16 = vector.load %arg8[%c0_5, %c0_6, %c0_7] : memref<16x8x128xf32, #tpu.memory_space<vmem>>, vector<1x8x128xf32>
    %17 = vector.shape_cast %16 : vector<1x8x128xf32> to vector<8x128xf32>
    %18 = vector.shape_cast %15 : vector<8x128xf32> to vector<1x8x128xf32>
    tpu.vector_store %arg8[%c0_5, %c0_6, %c0_7], %18 {strides = array<i32>} : memref<16x8x128xf32, #tpu.memory_space<vmem>>, vector<1x8x128xf32>,
    %c1_i32 = arith.constant 1 : i32
    %19 = arith.addi %2, %c1_i32 : i32
    %20 = arith.index_cast %19 : i32 to index
    %21 = memref.load %arg2[%20] : memref<32xi32, #tpu.memory_space<smem>>
    %c1_i32_8 = arith.constant 1 : i32
    %22 = arith.addi %0, %c1_i32_8 : i32
    %23 = arith.subi %21, %22 : i32
    %c7_i32_9 = arith.constant 7 : i32
    %24 = arith.addi %23, %c7_i32_9 : i32
    %c0_10 = arith.constant 0 : index
    %25 = arith.index_cast %21 : i32 to index
    %c0_11 = arith.constant 0 : index
    %26 = vector.load %arg3[%c0_10, %25, %c0_11] : memref<1x16x128xf32, #tpu.memory_space<vmem>>, vector<1x8x128xf32>
    %27 = vector.shape_cast %26 : vector<1x8x128xf32> to vector<8x128xf32>
    %28 = arith.index_cast %24 : i32 to index
    %c0_12 = arith.constant 0 : index
    %c0_13 = arith.constant 0 : index
    %29 = vector.load %arg5[%28, %c0_12, %c0_13] : memref<9x8x128xf32, #tpu.memory_space<vmem>>, vector<1x8x128xf32>
    %30 = vector.shape_cast %29 : vector<1x8x128xf32> to vector<8x128xf32>
    %31 = arith.addf %27, %30 : vector<8x128xf32>
    %c1 = arith.constant 1 : index
    %c0_14 = arith.constant 0 : index
    %c0_15 = arith.constant 0 : index
    %32 = vector.load %arg8[%c1, %c0_14, %c0_15] : memref<16x8x128xf32, #tpu.memory_space<vmem>>, vector<1x8x128xf32>
    %33 = vector.shape_cast %32 : vector<1x8x128xf32> to vector<8x128xf32>
    %34 = vector.shape_cast %31 : vector<8x128xf32> to vector<1x8x128xf32>
    tpu.vector_store %arg8[%c1, %c0_14, %c0_15], %34 {strides = array<i32>} : memref<16x8x128xf32, #tpu.memory_space<vmem>>, vector<1x8x128xf32>,
    %c2_i32 = arith.constant 2 : i32
    %35 = arith.addi %2, %c2_i32 : i32
    %36 = arith.index_cast %35 : i32 to index
    %37 = memref.load %arg2[%36] : memref<32xi32, #tpu.memory_space<smem>>
    %c2_i32_16 = arith.constant 2 : i32
    %38 = arith.addi %0, %c2_i32_16 : i32
    %39 = arith.subi %37, %38 : i32
    %c7_i32_17 = arith.constant 7 : i32
    %40 = arith.addi %39, %c7_i32_17 : i32
    %c0_18 = arith.constant 0 : index
    %41 = arith.index_cast %37 : i32 to index
    %c0_19 = arith.constant 0 : index
    %42 = vector.load %arg3[%c0_18, %41, %c0_19] : memref<1x16x128xf32, #tpu.memory_space<vmem>>, vector<1x8x128xf32>
    %43 = vector.shape_cast %42 : vector<1x8x128xf32> to vector<8x128xf32>
    %44 = arith.index_cast %40 : i32 to index
    %c0_20 = arith.constant 0 : index
    %c0_21 = arith.constant 0 : index
    %45 = vector.load %arg5[%44, %c0_20, %c0_21] : memref<9x8x128xf32, #tpu.memory_space<vmem>>, vector<1x8x128xf32>
    %46 = vector.shape_cast %45 : vector<1x8x128xf32> to vector<8x128xf32>
    %47 = arith.addf %43, %46 : vector<8x128xf32>
    %c2 = arith.constant 2 : index
    %c0_22 = arith.constant 0 : index
    %c0_23 = arith.constant 0 : index
    %48 = vector.load %arg8[%c2, %c0_22, %c0_23] : memref<16x8x128xf32, #tpu.memory_space<vmem>>, vector<1x8x128xf32>
    %49 = vector.shape_cast %48 : vector<1x8x128xf32> to vector<8x128xf32>
    %50 = vector.shape_cast %47 : vector<8x128xf32> to vector<1x8x128xf32>
    tpu.vector_store %arg8[%c2, %c0_22, %c0_23], %50 {strides = array<i32>} : memref<16x8x128xf32, #tpu.memory_space<vmem>>, vector<1x8x128xf32>,
    %c3_i32 = arith.constant 3 : i32
    %51 = arith.addi %2, %c3_i32 : i32
    %52 = arith.index_cast %51 : i32 to index
    %53 = memref.load %arg2[%52] : memref<32xi32, #tpu.memory_space<smem>>
    %c3_i32_24 = arith.constant 3 : i32
    %54 = arith.addi %0, %c3_i32_24 : i32
    %55 = arith.subi %53, %54 : i32
    %c7_i32_25 = arith.constant 7 : i32
    %56 = arith.addi %55, %c7_i32_25 : i32
    %c0_26 = arith.constant 0 : index
    %57 = arith.index_cast %53 : i32 to index
    %c0_27 = arith.constant 0 : index
    %58 = vector.load %arg3[%c0_26, %57, %c0_27] : memref<1x16x128xf32, #tpu.memory_space<vmem>>, vector<1x8x128xf32>
    %59 = vector.shape_cast %58 : vector<1x8x128xf32> to vector<8x128xf32>
    %60 = arith.index_cast %56 : i32 to index
    %c0_28 = arith.constant 0 : index
    %c0_29 = arith.constant 0 : index
    %61 = vector.load %arg5[%60, %c0_28, %c0_29] : memref<9x8x128xf32, #tpu.memory_space<vmem>>, vector<1x8x128xf32>
    %62 = vector.shape_cast %61 : vector<1x8x128xf32> to vector<8x128xf32>
    %63 = arith.addf %59, %62 : vector<8x128xf32>
    %c3 = arith.constant 3 : index
    %c0_30 = arith.constant 0 : index
    %c0_31 = arith.constant 0 : index
    %64 = vector.load %arg8[%c3, %c0_30, %c0_31] : memref<16x8x128xf32, #tpu.memory_space<vmem>>, vector<1x8x128xf32>
    %65 = vector.shape_cast %64 : vector<1x8x128xf32> to vector<8x128xf32>
    %66 = vector.shape_cast %63 : vector<8x128xf32> to vector<1x8x128xf32>
    tpu.vector_store %arg8[%c3, %c0_30, %c0_31], %66 {strides = array<i32>} : memref<16x8x128xf32, #tpu.memory_space<vmem>>, vector<1x8x128xf32>,
    %c4_i32 = arith.constant 4 : i32
    %67 = arith.addi %2, %c4_i32 : i32
    %68 = arith.index_cast %67 : i32 to index
    %69 = memref.load %arg2[%68] : memref<32xi32, #tpu.memory_space<smem>>
    %c4_i32_32 = arith.constant 4 : i32
    %70 = arith.addi %0, %c4_i32_32 : i32
    %71 = arith.subi %69, %70 : i32
    %c7_i32_33 = arith.constant 7 : i32
    %72 = arith.addi %71, %c7_i32_33 : i32
    %c0_34 = arith.constant 0 : index
    %73 = arith.index_cast %69 : i32 to index
    %c0_35 = arith.constant 0 : index
    %74 = vector.load %arg3[%c0_34, %73, %c0_35] : memref<1x16x128xf32, #tpu.memory_space<vmem>>, vector<1x8x128xf32>
    %75 = vector.shape_cast %74 : vector<1x8x128xf32> to vector<8x128xf32>
    %76 = arith.index_cast %72 : i32 to index
    %c0_36 = arith.constant 0 : index
    %c0_37 = arith.constant 0 : index
    %77 = vector.load %arg5[%76, %c0_36, %c0_37] : memref<9x8x128xf32, #tpu.memory_space<vmem>>, vector<1x8x128xf32>
    %78 = vector.shape_cast %77 : vector<1x8x128xf32> to vector<8x128xf32>
    %79 = arith.addf %75, %78 : vector<8x128xf32>
    %c4 = arith.constant 4 : index
    %c0_38 = arith.constant 0 : index
    %c0_39 = arith.constant 0 : index
    %80 = vector.load %arg8[%c4, %c0_38, %c0_39] : memref<16x8x128xf32, #tpu.memory_space<vmem>>, vector<1x8x128xf32>
    %81 = vector.shape_cast %80 : vector<1x8x128xf32> to vector<8x128xf32>
    %82 = vector.shape_cast %79 : vector<8x128xf32> to vector<1x8x128xf32>
    tpu.vector_store %arg8[%c4, %c0_38, %c0_39], %82 {strides = array<i32>} : memref<16x8x128xf32, #tpu.memory_space<vmem>>, vector<1x8x128xf32>,
    %c5_i32 = arith.constant 5 : i32
    %83 = arith.addi %2, %c5_i32 : i32
    %84 = arith.index_cast %83 : i32 to index
    %85 = memref.load %arg2[%84] : memref<32xi32, #tpu.memory_space<smem>>
    %c5_i32_40 = arith.constant 5 : i32
    %86 = arith.addi %0, %c5_i32_40 : i32
    %87 = arith.subi %85, %86 : i32
    %c7_i32_41 = arith.constant 7 : i32
    %88 = arith.addi %87, %c7_i32_41 : i32
    %c0_42 = arith.constant 0 : index
    %89 = arith.index_cast %85 : i32 to index
    %c0_43 = arith.constant 0 : index
    %90 = vector.load %arg3[%c0_42, %89, %c0_43] : memref<1x16x128xf32, #tpu.memory_space<vmem>>, vector<1x8x128xf32>
    %91 = vector.shape_cast %90 : vector<1x8x128xf32> to vector<8x128xf32>
    %92 = arith.index_cast %88 : i32 to index
    %c0_44 = arith.constant 0 : index
    %c0_45 = arith.constant 0 : index
    %93 = vector.load %arg5[%92, %c0_44, %c0_45] : memref<9x8x128xf32, #tpu.memory_space<vmem>>, vector<1x8x128xf32>
    %94 = vector.shape_cast %93 : vector<1x8x128xf32> to vector<8x128xf32>
    %95 = arith.addf %91, %94 : vector<8x128xf32>
    %c5 = arith.constant 5 : index
    %c0_46 = arith.constant 0 : index
    %c0_47 = arith.constant 0 : index
    %96 = vector.load %arg8[%c5, %c0_46, %c0_47] : memref<16x8x128xf32, #tpu.memory_space<vmem>>, vector<1x8x128xf32>
    %97 = vector.shape_cast %96 : vector<1x8x128xf32> to vector<8x128xf32>
    %98 = vector.shape_cast %95 : vector<8x128xf32> to vector<1x8x128xf32>
    tpu.vector_store %arg8[%c5, %c0_46, %c0_47], %98 {strides = array<i32>} : memref<16x8x128xf32, #tpu.memory_space<vmem>>, vector<1x8x128xf32>,
    %c6_i32 = arith.constant 6 : i32
    %99 = arith.addi %2, %c6_i32 : i32
    %100 = arith.index_cast %99 : i32 to index
    %101 = memref.load %arg2[%100] : memref<32xi32, #tpu.memory_space<smem>>
    %c6_i32_48 = arith.constant 6 : i32
    %102 = arith.addi %0, %c6_i32_48 : i32
    %103 = arith.subi %101, %102 : i32
    %c7_i32_49 = arith.constant 7 : i32
    %104 = arith.addi %103, %c7_i32_49 : i32
    %c0_50 = arith.constant 0 : index
    %105 = arith.index_cast %101 : i32 to index
    %c0_51 = arith.constant 0 : index
    %106 = vector.load %arg3[%c0_50, %105, %c0_51] : memref<1x16x128xf32, #tpu.memory_space<vmem>>, vector<1x8x128xf32>
    %107 = vector.shape_cast %106 : vector<1x8x128xf32> to vector<8x128xf32>
    %108 = arith.index_cast %104 : i32 to index
    %c0_52 = arith.constant 0 : index
    %c0_53 = arith.constant 0 : index
    %109 = vector.load %arg5[%108, %c0_52, %c0_53] : memref<9x8x128xf32, #tpu.memory_space<vmem>>, vector<1x8x128xf32>
    %110 = vector.shape_cast %109 : vector<1x8x128xf32> to vector<8x128xf32>
    %111 = arith.addf %107, %110 : vector<8x128xf32>
    %c6 = arith.constant 6 : index
    %c0_54 = arith.constant 0 : index
    %c0_55 = arith.constant 0 : index
    %112 = vector.load %arg8[%c6, %c0_54, %c0_55] : memref<16x8x128xf32, #tpu.memory_space<vmem>>, vector<1x8x128xf32>
    %113 = vector.shape_cast %112 : vector<1x8x128xf32> to vector<8x128xf32>
    %114 = vector.shape_cast %111 : vector<8x128xf32> to vector<1x8x128xf32>
    tpu.vector_store %arg8[%c6, %c0_54, %c0_55], %114 {strides = array<i32>} : memref<16x8x128xf32, #tpu.memory_space<vmem>>, vector<1x8x128xf32>,
    %c7_i32_56 = arith.constant 7 : i32
    %115 = arith.addi %2, %c7_i32_56 : i32
    %116 = arith.index_cast %115 : i32 to index
    %117 = memref.load %arg2[%116] : memref<32xi32, #tpu.memory_space<smem>>
    %c7_i32_57 = arith.constant 7 : i32
    %118 = arith.addi %0, %c7_i32_57 : i32
    %119 = arith.subi %117, %118 : i32
    %c7_i32_58 = arith.constant 7 : i32
    %120 = arith.addi %119, %c7_i32_58 : i32
    %c0_59 = arith.constant 0 : index
    %121 = arith.index_cast %117 : i32 to index
    %c0_60 = arith.constant 0 : index
    %122 = vector.load %arg3[%c0_59, %121, %c0_60] : memref<1x16x128xf32, #tpu.memory_space<vmem>>, vector<1x8x128xf32>
    %123 = vector.shape_cast %122 : vector<1x8x128xf32> to vector<8x128xf32>
    %124 = arith.index_cast %120 : i32 to index
    %c0_61 = arith.constant 0 : index
    %c0_62 = arith.constant 0 : index
    %125 = vector.load %arg5[%124, %c0_61, %c0_62] : memref<9x8x128xf32, #tpu.memory_space<vmem>>, vector<1x8x128xf32>
    %126 = vector.shape_cast %125 : vector<1x8x128xf32> to vector<8x128xf32>
    %127 = arith.addf %123, %126 : vector<8x128xf32>
    %c7 = arith.constant 7 : index
    %c0_63 = arith.constant 0 : index
    %c0_64 = arith.constant 0 : index
    %128 = vector.load %arg8[%c7, %c0_63, %c0_64] : memref<16x8x128xf32, #tpu.memory_space<vmem>>, vector<1x8x128xf32>
    %129 = vector.shape_cast %128 : vector<1x8x128xf32> to vector<8x128xf32>
    %130 = vector.shape_cast %127 : vector<8x128xf32> to vector<1x8x128xf32>
    tpu.vector_store %arg8[%c7, %c0_63, %c0_64], %130 {strides = array<i32>} : memref<16x8x128xf32, #tpu.memory_space<vmem>>, vector<1x8x128xf32>,
    %c8_i32 = arith.constant 8 : i32
    %131 = arith.addi %2, %c8_i32 : i32
    %132 = arith.index_cast %131 : i32 to index
    %133 = memref.load %arg2[%132] : memref<32xi32, #tpu.memory_space<smem>>
    %c8_i32_65 = arith.constant 8 : i32
    %134 = arith.addi %0, %c8_i32_65 : i32
    %135 = arith.subi %133, %134 : i32
    %c7_i32_66 = arith.constant 7 : i32
    %136 = arith.addi %135, %c7_i32_66 : i32
    %c0_67 = arith.constant 0 : index
    %137 = arith.index_cast %133 : i32 to index
    %c0_68 = arith.constant 0 : index
    %138 = vector.load %arg3[%c0_67, %137, %c0_68] : memref<1x16x128xf32, #tpu.memory_space<vmem>>, vector<1x8x128xf32>
    %139 = vector.shape_cast %138 : vector<1x8x128xf32> to vector<8x128xf32>
    %140 = arith.index_cast %136 : i32 to index
    %c0_69 = arith.constant 0 : index
    %c0_70 = arith.constant 0 : index
    %141 = vector.load %arg5[%140, %c0_69, %c0_70] : memref<9x8x128xf32, #tpu.memory_space<vmem>>, vector<1x8x128xf32>
    %142 = vector.shape_cast %141 : vector<1x8x128xf32> to vector<8x128xf32>
    %143 = arith.addf %139, %142 : vector<8x128xf32>
    %c8 = arith.constant 8 : index
    %c0_71 = arith.constant 0 : index
    %c0_72 = arith.constant 0 : index
    %144 = vector.load %arg8[%c8, %c0_71, %c0_72] : memref<16x8x128xf32, #tpu.memory_space<vmem>>, vector<1x8x128xf32>
    %145 = vector.shape_cast %144 : vector<1x8x128xf32> to vector<8x128xf32>
    %146 = vector.shape_cast %143 : vector<8x128xf32> to vector<1x8x128xf32>
    tpu.vector_store %arg8[%c8, %c0_71, %c0_72], %146 {strides = array<i32>} : memref<16x8x128xf32, #tpu.memory_space<vmem>>, vector<1x8x128xf32>,
    %c9_i32 = arith.constant 9 : i32
    %147 = arith.addi %2, %c9_i32 : i32
    %148 = arith.index_cast %147 : i32 to index
    %149 = memref.load %arg2[%148] : memref<32xi32, #tpu.memory_space<smem>>
    %c9_i32_73 = arith.constant 9 : i32
    %150 = arith.addi %0, %c9_i32_73 : i32
    %151 = arith.subi %149, %150 : i32
    %c7_i32_74 = arith.constant 7 : i32
    %152 = arith.addi %151, %c7_i32_74 : i32
    %c0_75 = arith.constant 0 : index
    %153 = arith.index_cast %149 : i32 to index
    %c0_76 = arith.constant 0 : index
    %154 = vector.load %arg3[%c0_75, %153, %c0_76] : memref<1x16x128xf32, #tpu.memory_space<vmem>>, vector<1x8x128xf32>
    %155 = vector.shape_cast %154 : vector<1x8x128xf32> to vector<8x128xf32>
    %156 = arith.index_cast %152 : i32 to index
    %c0_77 = arith.constant 0 : index
    %c0_78 = arith.constant 0 : index
    %157 = vector.load %arg5[%156, %c0_77, %c0_78] : memref<9x8x128xf32, #tpu.memory_space<vmem>>, vector<1x8x128xf32>
    %158 = vector.shape_cast %157 : vector<1x8x128xf32> to vector<8x128xf32>
    %159 = arith.addf %155, %158 : vector<8x128xf32>
    %c9 = arith.constant 9 : index
    %c0_79 = arith.constant 0 : index
    %c0_80 = arith.constant 0 : index
    %160 = vector.load %arg8[%c9, %c0_79, %c0_80] : memref<16x8x128xf32, #tpu.memory_space<vmem>>, vector<1x8x128xf32>
    %161 = vector.shape_cast %160 : vector<1x8x128xf32> to vector<8x128xf32>
    %162 = vector.shape_cast %159 : vector<8x128xf32> to vector<1x8x128xf32>
    tpu.vector_store %arg8[%c9, %c0_79, %c0_80], %162 {strides = array<i32>} : memref<16x8x128xf32, #tpu.memory_space<vmem>>, vector<1x8x128xf32>,
    %c10_i32 = arith.constant 10 : i32
    %163 = arith.addi %2, %c10_i32 : i32
    %164 = arith.index_cast %163 : i32 to index
    %165 = memref.load %arg2[%164] : memref<32xi32, #tpu.memory_space<smem>>
    %c10_i32_81 = arith.constant 10 : i32
    %166 = arith.addi %0, %c10_i32_81 : i32
    %167 = arith.subi %165, %166 : i32
    %c7_i32_82 = arith.constant 7 : i32
    %168 = arith.addi %167, %c7_i32_82 : i32
    %c0_83 = arith.constant 0 : index
    %169 = arith.index_cast %165 : i32 to index
    %c0_84 = arith.constant 0 : index
    %170 = vector.load %arg3[%c0_83, %169, %c0_84] : memref<1x16x128xf32, #tpu.memory_space<vmem>>, vector<1x8x128xf32>
    %171 = vector.shape_cast %170 : vector<1x8x128xf32> to vector<8x128xf32>
    %172 = arith.index_cast %168 : i32 to index
    %c0_85 = arith.constant 0 : index
    %c0_86 = arith.constant 0 : index
    %173 = vector.load %arg5[%172, %c0_85, %c0_86] : memref<9x8x128xf32, #tpu.memory_space<vmem>>, vector<1x8x128xf32>
    %174 = vector.shape_cast %173 : vector<1x8x128xf32> to vector<8x128xf32>
    %175 = arith.addf %171, %174 : vector<8x128xf32>
    %c10 = arith.constant 10 : index
    %c0_87 = arith.constant 0 : index
    %c0_88 = arith.constant 0 : index
    %176 = vector.load %arg8[%c10, %c0_87, %c0_88] : memref<16x8x128xf32, #tpu.memory_space<vmem>>, vector<1x8x128xf32>
    %177 = vector.shape_cast %176 : vector<1x8x128xf32> to vector<8x128xf32>
    %178 = vector.shape_cast %175 : vector<8x128xf32> to vector<1x8x128xf32>
    tpu.vector_store %arg8[%c10, %c0_87, %c0_88], %178 {strides = array<i32>} : memref<16x8x128xf32, #tpu.memory_space<vmem>>, vector<1x8x128xf32>,
    %c11_i32 = arith.constant 11 : i32
    %179 = arith.addi %2, %c11_i32 : i32
    %180 = arith.index_cast %179 : i32 to index
    %181 = memref.load %arg2[%180] : memref<32xi32, #tpu.memory_space<smem>>
    %c11_i32_89 = arith.constant 11 : i32
    %182 = arith.addi %0, %c11_i32_89 : i32
    %183 = arith.subi %181, %182 : i32
    %c7_i32_90 = arith.constant 7 : i32
    %184 = arith.addi %183, %c7_i32_90 : i32
    %c0_91 = arith.constant 0 : index
    %185 = arith.index_cast %181 : i32 to index
    %c0_92 = arith.constant 0 : index
    %186 = vector.load %arg3[%c0_91, %185, %c0_92] : memref<1x16x128xf32, #tpu.memory_space<vmem>>, vector<1x8x128xf32>
    %187 = vector.shape_cast %186 : vector<1x8x128xf32> to vector<8x128xf32>
    %188 = arith.index_cast %184 : i32 to index
    %c0_93 = arith.constant 0 : index
    %c0_94 = arith.constant 0 : index
    %189 = vector.load %arg5[%188, %c0_93, %c0_94] : memref<9x8x128xf32, #tpu.memory_space<vmem>>, vector<1x8x128xf32>
    %190 = vector.shape_cast %189 : vector<1x8x128xf32> to vector<8x128xf32>
    %191 = arith.addf %187, %190 : vector<8x128xf32>
    %c11 = arith.constant 11 : index
    %c0_95 = arith.constant 0 : index
    %c0_96 = arith.constant 0 : index
    %192 = vector.load %arg8[%c11, %c0_95, %c0_96] : memref<16x8x128xf32, #tpu.memory_space<vmem>>, vector<1x8x128xf32>
    %193 = vector.shape_cast %192 : vector<1x8x128xf32> to vector<8x128xf32>
    %194 = vector.shape_cast %191 : vector<8x128xf32> to vector<1x8x128xf32>
    tpu.vector_store %arg8[%c11, %c0_95, %c0_96], %194 {strides = array<i32>} : memref<16x8x128xf32, #tpu.memory_space<vmem>>, vector<1x8x128xf32>,
    %c12_i32 = arith.constant 12 : i32
    %195 = arith.addi %2, %c12_i32 : i32
    %196 = arith.index_cast %195 : i32 to index
    %197 = memref.load %arg2[%196] : memref<32xi32, #tpu.memory_space<smem>>
    %c12_i32_97 = arith.constant 12 : i32
    %198 = arith.addi %0, %c12_i32_97 : i32
    %199 = arith.subi %197, %198 : i32
    %c7_i32_98 = arith.constant 7 : i32
    %200 = arith.addi %199, %c7_i32_98 : i32
    %c0_99 = arith.constant 0 : index
    %201 = arith.index_cast %197 : i32 to index
    %c0_100 = arith.constant 0 : index
    %202 = vector.load %arg3[%c0_99, %201, %c0_100] : memref<1x16x128xf32, #tpu.memory_space<vmem>>, vector<1x8x128xf32>
    %203 = vector.shape_cast %202 : vector<1x8x128xf32> to vector<8x128xf32>
    %204 = arith.index_cast %200 : i32 to index
    %c0_101 = arith.constant 0 : index
    %c0_102 = arith.constant 0 : index
    %205 = vector.load %arg5[%204, %c0_101, %c0_102] : memref<9x8x128xf32, #tpu.memory_space<vmem>>, vector<1x8x128xf32>
    %206 = vector.shape_cast %205 : vector<1x8x128xf32> to vector<8x128xf32>
    %207 = arith.addf %203, %206 : vector<8x128xf32>
    %c12 = arith.constant 12 : index
    %c0_103 = arith.constant 0 : index
    %c0_104 = arith.constant 0 : index
    %208 = vector.load %arg8[%c12, %c0_103, %c0_104] : memref<16x8x128xf32, #tpu.memory_space<vmem>>, vector<1x8x128xf32>
    %209 = vector.shape_cast %208 : vector<1x8x128xf32> to vector<8x128xf32>
    %210 = vector.shape_cast %207 : vector<8x128xf32> to vector<1x8x128xf32>
    tpu.vector_store %arg8[%c12, %c0_103, %c0_104], %210 {strides = array<i32>} : memref<16x8x128xf32, #tpu.memory_space<vmem>>, vector<1x8x128xf32>,
    %c13_i32 = arith.constant 13 : i32
    %211 = arith.addi %2, %c13_i32 : i32
    %212 = arith.index_cast %211 : i32 to index
    %213 = memref.load %arg2[%212] : memref<32xi32, #tpu.memory_space<smem>>
    %c13_i32_105 = arith.constant 13 : i32
    %214 = arith.addi %0, %c13_i32_105 : i32
    %215 = arith.subi %213, %214 : i32
    %c7_i32_106 = arith.constant 7 : i32
    %216 = arith.addi %215, %c7_i32_106 : i32
    %c0_107 = arith.constant 0 : index
    %217 = arith.index_cast %213 : i32 to index
    %c0_108 = arith.constant 0 : index
    %218 = vector.load %arg3[%c0_107, %217, %c0_108] : memref<1x16x128xf32, #tpu.memory_space<vmem>>, vector<1x8x128xf32>
    %219 = vector.shape_cast %218 : vector<1x8x128xf32> to vector<8x128xf32>
    %220 = arith.index_cast %216 : i32 to index
    %c0_109 = arith.constant 0 : index
    %c0_110 = arith.constant 0 : index
    %221 = vector.load %arg5[%220, %c0_109, %c0_110] : memref<9x8x128xf32, #tpu.memory_space<vmem>>, vector<1x8x128xf32>
    %222 = vector.shape_cast %221 : vector<1x8x128xf32> to vector<8x128xf32>
    %223 = arith.addf %219, %222 : vector<8x128xf32>
    %c13 = arith.constant 13 : index
    %c0_111 = arith.constant 0 : index
    %c0_112 = arith.constant 0 : index
    %224 = vector.load %arg8[%c13, %c0_111, %c0_112] : memref<16x8x128xf32, #tpu.memory_space<vmem>>, vector<1x8x128xf32>
    %225 = vector.shape_cast %224 : vector<1x8x128xf32> to vector<8x128xf32>
    %226 = vector.shape_cast %223 : vector<8x128xf32> to vector<1x8x128xf32>
    tpu.vector_store %arg8[%c13, %c0_111, %c0_112], %226 {strides = array<i32>} : memref<16x8x128xf32, #tpu.memory_space<vmem>>, vector<1x8x128xf32>,
    %c14_i32 = arith.constant 14 : i32
    %227 = arith.addi %2, %c14_i32 : i32
    %228 = arith.index_cast %227 : i32 to index
    %229 = memref.load %arg2[%228] : memref<32xi32, #tpu.memory_space<smem>>
    %c14_i32_113 = arith.constant 14 : i32
    %230 = arith.addi %0, %c14_i32_113 : i32
    %231 = arith.subi %229, %230 : i32
    %c7_i32_114 = arith.constant 7 : i32
    %232 = arith.addi %231, %c7_i32_114 : i32
    %c0_115 = arith.constant 0 : index
    %233 = arith.index_cast %229 : i32 to index
    %c0_116 = arith.constant 0 : index
    %234 = vector.load %arg3[%c0_115, %233, %c0_116] : memref<1x16x128xf32, #tpu.memory_space<vmem>>, vector<1x8x128xf32>
    %235 = vector.shape_cast %234 : vector<1x8x128xf32> to vector<8x128xf32>
    %236 = arith.index_cast %232 : i32 to index
    %c0_117 = arith.constant 0 : index
    %c0_118 = arith.constant 0 : index
    %237 = vector.load %arg5[%236, %c0_117, %c0_118] : memref<9x8x128xf32, #tpu.memory_space<vmem>>, vector<1x8x128xf32>
    %238 = vector.shape_cast %237 : vector<1x8x128xf32> to vector<8x128xf32>
    %239 = arith.addf %235, %238 : vector<8x128xf32>
    %c14 = arith.constant 14 : index
    %c0_119 = arith.constant 0 : index
    %c0_120 = arith.constant 0 : index
    %240 = vector.load %arg8[%c14, %c0_119, %c0_120] : memref<16x8x128xf32, #tpu.memory_space<vmem>>, vector<1x8x128xf32>
    %241 = vector.shape_cast %240 : vector<1x8x128xf32> to vector<8x128xf32>
    %242 = vector.shape_cast %239 : vector<8x128xf32> to vector<1x8x128xf32>
    tpu.vector_store %arg8[%c14, %c0_119, %c0_120], %242 {strides = array<i32>} : memref<16x8x128xf32, #tpu.memory_space<vmem>>, vector<1x8x128xf32>,
    %c15_i32 = arith.constant 15 : i32
    %243 = arith.addi %2, %c15_i32 : i32
    %244 = arith.index_cast %243 : i32 to index
    %245 = memref.load %arg2[%244] : memref<32xi32, #tpu.memory_space<smem>>
    %c15_i32_121 = arith.constant 15 : i32
    %246 = arith.addi %0, %c15_i32_121 : i32
    %247 = arith.subi %245, %246 : i32
    %c7_i32_122 = arith.constant 7 : i32
    %248 = arith.addi %247, %c7_i32_122 : i32
    %c0_123 = arith.constant 0 : index
    %249 = arith.index_cast %245 : i32 to index
    %c0_124 = arith.constant 0 : index
    %250 = vector.load %arg3[%c0_123, %249, %c0_124] : memref<1x16x128xf32, #tpu.memory_space<vmem>>, vector<1x8x128xf32>
    %251 = vector.shape_cast %250 : vector<1x8x128xf32> to vector<8x128xf32>
    %252 = arith.index_cast %248 : i32 to index
    %c0_125 = arith.constant 0 : index
    %c0_126 = arith.constant 0 : index
    %253 = vector.load %arg5[%252, %c0_125, %c0_126] : memref<9x8x128xf32, #tpu.memory_space<vmem>>, vector<1x8x128xf32>
    %254 = vector.shape_cast %253 : vector<1x8x128xf32> to vector<8x128xf32>
    %255 = arith.addf %251, %254 : vector<8x128xf32>
    %c15 = arith.constant 15 : index
    %c0_127 = arith.constant 0 : index
    %c0_128 = arith.constant 0 : index
    %256 = vector.load %arg8[%c15, %c0_127, %c0_128] : memref<16x8x128xf32, #tpu.memory_space<vmem>>, vector<1x8x128xf32>
    %257 = vector.shape_cast %256 : vector<1x8x128xf32> to vector<8x128xf32>
    %258 = vector.shape_cast %255 : vector<8x128xf32> to vector<1x8x128xf32>
    tpu.vector_store %arg8[%c15, %c0_127, %c0_128], %258 {strides = array<i32>} : memref<16x8x128xf32, #tpu.memory_space<vmem>>, vector<1x8x128xf32>,
    %c0_129 = arith.constant 0 : index
    %c0_130 = arith.constant 0 : index
    %259 = vector.load %arg6[%c0_129, %c0_130] : memref<12x128xf32, #tpu.memory_space<vmem>>, vector<12x128xf32>
    %260 = vector.extract_strided_slice %259 {offsets = [0, 0], sizes = [3, 128], strides = [1, 1]} : vector<12x128xf32> to vector<3x128xf32>
    %261 = vector.extract_strided_slice %259 {offsets = [3, 0], sizes = [1, 128], strides = [1, 1]} : vector<12x128xf32> to vector<1x128xf32>
    %262 = vector.extract_strided_slice %259 {offsets = [4, 0], sizes = [1, 128], strides = [1, 1]} : vector<12x128xf32> to vector<1x128xf32>
    %263 = vector.extract_strided_slice %259 {offsets = [5, 0], sizes = [1, 128], strides = [1, 1]} : vector<12x128xf32> to vector<1x128xf32>
    %264 = vector.extract_strided_slice %259 {offsets = [6, 0], sizes = [3, 128], strides = [1, 1]} : vector<12x128xf32> to vector<3x128xf32>
    %265 = vector.extract_strided_slice %259 {offsets = [9, 0], sizes = [1, 128], strides = [1, 1]} : vector<12x128xf32> to vector<1x128xf32>
    %266 = vector.extract_strided_slice %259 {offsets = [10, 0], sizes = [1, 128], strides = [1, 1]} : vector<12x128xf32> to vector<1x128xf32>
    %267 = vector.extract_strided_slice %259 {offsets = [11, 0], sizes = [1, 128], strides = [1, 1]} : vector<12x128xf32> to vector<1x128xf32>
    %c0_131 = arith.constant 0 : index
    %c0_132 = arith.constant 0 : index
    %c0_133 = arith.constant 0 : index
    %268 = vector.load %arg8[%c0_131, %c0_132, %c0_133] : memref<16x8x128xf32, #tpu.memory_space<vmem>>, vector<16x8x128xf32>
    %269 = vector.extract_strided_slice %268 {offsets = [0, 0, 0], sizes = [16, 6, 128], strides = [1, 1, 1]} : vector<16x8x128xf32> to vector<16x6x128xf32>
    %270 = vector.extract_strided_slice %260 {offsets = [0, 0], sizes = [1, 128], strides = [1, 1]} : vector<3x128xf32> to vector<1x128xf32>
    %271 = vector.shape_cast %270 : vector<1x128xf32> to vector<1x1x128xf32>
    %272 = vector.broadcast %271 : vector<1x1x128xf32> to vector<16x6x128xf32>
    %273 = arith.mulf %269, %272 : vector<16x6x128xf32>
    %274 = vector.extract_strided_slice %268 {offsets = [0, 1, 0], sizes = [16, 6, 128], strides = [1, 1, 1]} : vector<16x8x128xf32> to vector<16x6x128xf32>
    %275 = vector.extract_strided_slice %260 {offsets = [1, 0], sizes = [1, 128], strides = [1, 1]} : vector<3x128xf32> to vector<1x128xf32>
    %276 = vector.shape_cast %275 : vector<1x128xf32> to vector<1x1x128xf32>
    %277 = vector.broadcast %276 : vector<1x1x128xf32> to vector<16x6x128xf32>
    %278 = arith.mulf %274, %277 : vector<16x6x128xf32>
    %279 = arith.addf %273, %278 : vector<16x6x128xf32>
    %280 = vector.extract_strided_slice %268 {offsets = [0, 2, 0], sizes = [16, 6, 128], strides = [1, 1, 1]} : vector<16x8x128xf32> to vector<16x6x128xf32>
    %281 = vector.extract_strided_slice %260 {offsets = [2, 0], sizes = [1, 128], strides = [1, 1]} : vector<3x128xf32> to vector<1x128xf32>
    %282 = vector.shape_cast %281 : vector<1x128xf32> to vector<1x1x128xf32>
    %283 = vector.broadcast %282 : vector<1x1x128xf32> to vector<16x6x128xf32>
    %284 = arith.mulf %280, %283 : vector<16x6x128xf32>
    %285 = arith.addf %279, %284 : vector<16x6x128xf32>
    %286 = vector.shape_cast %261 : vector<1x128xf32> to vector<1x1x128xf32>
    %287 = vector.broadcast %286 : vector<1x1x128xf32> to vector<16x6x128xf32>
    %288 = arith.addf %285, %287 : vector<16x6x128xf32>
    %cst = arith.constant dense<0.000000e+00> : vector<16x6xf32>
    %289 = vector.multi_reduction <add>, %288, %cst [2] : vector<16x6x128xf32> to vector<16x6xf32>
    %290 = vector.shape_cast %289 : vector<16x6xf32> to vector<16x6x1xf32>
    %cst_134 = arith.constant 1.280000e+02 : f32
    %291 = vector.broadcast %cst_134 : f32 to vector<16x6x1xf32>
    %292 = arith.divf %290, %291 : vector<16x6x1xf32>
    %293 = vector.broadcast %292 : vector<16x6x1xf32> to vector<16x6x128xf32>
    %294 = arith.subf %288, %293 : vector<16x6x128xf32>
    %295 = arith.mulf %294, %294 : vector<16x6x128xf32>
    %cst_135 = arith.constant dense<0.000000e+00> : vector<16x6xf32>
    %296 = vector.multi_reduction <add>, %295, %cst_135 [2] : vector<16x6x128xf32> to vector<16x6xf32>
    %297 = vector.shape_cast %296 : vector<16x6xf32> to vector<16x6x1xf32>
    %cst_136 = arith.constant 1.280000e+02 : f32
    %298 = vector.broadcast %cst_136 : f32 to vector<16x6x1xf32>
    %299 = arith.divf %297, %298 : vector<16x6x1xf32>
    %300 = vector.broadcast %292 : vector<16x6x1xf32> to vector<16x6x128xf32>
    %301 = arith.subf %288, %300 : vector<16x6x128xf32>
    %cst_137 = arith.constant 9.99999974E-6 : f32
    %302 = vector.broadcast %cst_137 : f32 to vector<16x6x1xf32>
    %303 = arith.addf %299, %302 : vector<16x6x1xf32>
    %304 = math.rsqrt %303 : vector<16x6x1xf32>
    %305 = vector.broadcast %304 : vector<16x6x1xf32> to vector<16x6x128xf32>
    %306 = arith.mulf %301, %305 : vector<16x6x128xf32>
    %307 = vector.shape_cast %262 : vector<1x128xf32> to vector<1x1x128xf32>
    %308 = vector.broadcast %307 : vector<1x1x128xf32> to vector<16x6x128xf32>
    %309 = arith.mulf %306, %308 : vector<16x6x128xf32>
    %310 = vector.shape_cast %263 : vector<1x128xf32> to vector<1x1x128xf32>
    %311 = vector.broadcast %310 : vector<1x1x128xf32> to vector<16x6x128xf32>
    %312 = arith.addf %309, %311 : vector<16x6x128xf32>
    %cst_138 = arith.constant 0.000000e+00 : f32
    %313 = vector.broadcast %cst_138 : f32 to vector<16x6x128xf32>
    %314 = arith.maximumf %312, %313 : vector<16x6x128xf32>
    %315 = vector.extract_strided_slice %314 {offsets = [0, 0, 0], sizes = [16, 4, 128], strides = [1, 1, 1]} : vector<16x6x128xf32> to vector<16x4x128xf32>
    %316 = vector.extract_strided_slice %264 {offsets = [0, 0], sizes = [1, 128], strides = [1, 1]} : vector<3x128xf32> to vector<1x128xf32>
    %317 = vector.shape_cast %316 : vector<1x128xf32> to vector<1x1x128xf32>
    %318 = vector.broadcast %317 : vector<1x1x128xf32> to vector<16x4x128xf32>
    %319 = arith.mulf %315, %318 : vector<16x4x128xf32>
    %320 = vector.extract_strided_slice %314 {offsets = [0, 1, 0], sizes = [16, 4, 128], strides = [1, 1, 1]} : vector<16x6x128xf32> to vector<16x4x128xf32>
    %321 = vector.extract_strided_slice %264 {offsets = [1, 0], sizes = [1, 128], strides = [1, 1]} : vector<3x128xf32> to vector<1x128xf32>
    %322 = vector.shape_cast %321 : vector<1x128xf32> to vector<1x1x128xf32>
    %323 = vector.broadcast %322 : vector<1x1x128xf32> to vector<16x4x128xf32>
    %324 = arith.mulf %320, %323 : vector<16x4x128xf32>
    %325 = arith.addf %319, %324 : vector<16x4x128xf32>
    %326 = vector.extract_strided_slice %314 {offsets = [0, 2, 0], sizes = [16, 4, 128], strides = [1, 1, 1]} : vector<16x6x128xf32> to vector<16x4x128xf32>
    %327 = vector.extract_strided_slice %264 {offsets = [2, 0], sizes = [1, 128], strides = [1, 1]} : vector<3x128xf32> to vector<1x128xf32>
    %328 = vector.shape_cast %327 : vector<1x128xf32> to vector<1x1x128xf32>
    %329 = vector.broadcast %328 : vector<1x1x128xf32> to vector<16x4x128xf32>
    %330 = arith.mulf %326, %329 : vector<16x4x128xf32>
    %331 = arith.addf %325, %330 : vector<16x4x128xf32>
    %332 = vector.shape_cast %265 : vector<1x128xf32> to vector<1x1x128xf32>
    %333 = vector.broadcast %332 : vector<1x1x128xf32> to vector<16x4x128xf32>
    %334 = arith.addf %331, %333 : vector<16x4x128xf32>
    %cst_139 = arith.constant dense<0.000000e+00> : vector<16x4xf32>
    %335 = vector.multi_reduction <add>, %334, %cst_139 [2] : vector<16x4x128xf32> to vector<16x4xf32>
    %336 = vector.shape_cast %335 : vector<16x4xf32> to vector<16x4x1xf32>
    %cst_140 = arith.constant 1.280000e+02 : f32
    %337 = vector.broadcast %cst_140 : f32 to vector<16x4x1xf32>
    %338 = arith.divf %336, %337 : vector<16x4x1xf32>
    %339 = vector.broadcast %338 : vector<16x4x1xf32> to vector<16x4x128xf32>
    %340 = arith.subf %334, %339 : vector<16x4x128xf32>
    %341 = arith.mulf %340, %340 : vector<16x4x128xf32>
    %cst_141 = arith.constant dense<0.000000e+00> : vector<16x4xf32>
    %342 = vector.multi_reduction <add>, %341, %cst_141 [2] : vector<16x4x128xf32> to vector<16x4xf32>
    %343 = vector.shape_cast %342 : vector<16x4xf32> to vector<16x4x1xf32>
    %cst_142 = arith.constant 1.280000e+02 : f32
    %344 = vector.broadcast %cst_142 : f32 to vector<16x4x1xf32>
    %345 = arith.divf %343, %344 : vector<16x4x1xf32>
    %346 = vector.broadcast %338 : vector<16x4x1xf32> to vector<16x4x128xf32>
    %347 = arith.subf %334, %346 : vector<16x4x128xf32>
    %cst_143 = arith.constant 9.99999974E-6 : f32
    %348 = vector.broadcast %cst_143 : f32 to vector<16x4x1xf32>
    %349 = arith.addf %345, %348 : vector<16x4x1xf32>
    %350 = math.rsqrt %349 : vector<16x4x1xf32>
    %351 = vector.broadcast %350 : vector<16x4x1xf32> to vector<16x4x128xf32>
    %352 = arith.mulf %347, %351 : vector<16x4x128xf32>
    %353 = vector.shape_cast %266 : vector<1x128xf32> to vector<1x1x128xf32>
    %354 = vector.broadcast %353 : vector<1x1x128xf32> to vector<16x4x128xf32>
    %355 = arith.mulf %352, %354 : vector<16x4x128xf32>
    %356 = vector.shape_cast %267 : vector<1x128xf32> to vector<1x1x128xf32>
    %357 = vector.broadcast %356 : vector<1x1x128xf32> to vector<16x4x128xf32>
    %358 = arith.addf %355, %357 : vector<16x4x128xf32>
    %cst_144 = arith.constant 0.000000e+00 : f32
    %359 = vector.broadcast %cst_144 : f32 to vector<16x4x128xf32>
    %360 = arith.maximumf %358, %359 : vector<16x4x128xf32>
    %c0_145 = arith.constant 0 : index
    %c0_146 = arith.constant 0 : index
    %c0_147 = arith.constant 0 : index
    %c0_148 = arith.constant 0 : index
    %361 = vector.load %arg4[%c0_145, %c0_146, %c0_147, %c0_148] : memref<1x16x1x2xi32, #tpu.memory_space<vmem>>, vector<1x16x1x2xi32>
    %362 = vector.shape_cast %361 : vector<1x16x1x2xi32> to vector<16x1x2xi32>
    %363 = vector.extract_strided_slice %362 {offsets = [0, 0, 0], sizes = [16, 1, 1], strides = [1, 1, 1]} : vector<16x1x2xi32> to vector<16x1x1xi32>
    %364 = vector.extract_strided_slice %362 {offsets = [0, 0, 1], sizes = [16, 1, 1], strides = [1, 1, 1]} : vector<16x1x2xi32> to vector<16x1x1xi32>
    %365 = tpu.iota {dimensions = array<i32: 1>} : vector<16x4x1xi32>
    %366 = vector.broadcast %363 : vector<16x1x1xi32> to vector<16x4x1xi32>
    %367 = arith.cmpi sge, %365, %366 : vector<16x4x1xi32>
    %368 = vector.broadcast %364 : vector<16x1x1xi32> to vector<16x4x1xi32>
    %369 = arith.cmpi sle, %365, %368 : vector<16x4x1xi32>
    %370 = arith.andi %367, %369 : vector<16x4x1xi1>
    %cst_149 = arith.constant 0xFF800000 : f32
    %371 = vector.shape_cast %370 : vector<16x4x1xi1> to vector<16x4x1xi1>
    %372 = vector.broadcast %371 : vector<16x4x1xi1> to vector<16x4x128xi1>
    %373 = vector.broadcast %cst_149 : f32 to vector<16x4x128xf32>
    %374 = arith.select %372, %360, %373 : vector<16x4x128xi1>, vector<16x4x128xf32>
    %cst_150 = arith.constant dense<0xFF800000> : vector<16x128xf32>
    %375 = vector.multi_reduction <maximumf>, %374, %cst_150 [1] : vector<16x4x128xf32> to vector<16x128xf32>
    %c0_151 = arith.constant 0 : index
    %c0_152 = arith.constant 0 : index
    %c0_153 = arith.constant 0 : index
    %376 = vector.load %arg7[%c0_151, %c0_152, %c0_153] : memref<1x16x128xf32, #tpu.memory_space<vmem>>, vector<1x16x128xf32>
    %377 = vector.shape_cast %376 : vector<1x16x128xf32> to vector<16x128xf32>
    %378 = vector.shape_cast %375 : vector<16x128xf32> to vector<1x16x128xf32>
    tpu.vector_store %arg7[%c0_151, %c0_152, %c0_153], %378 {strides = array<i32>} : memref<1x16x128xf32, #tpu.memory_space<vmem>>, vector<1x16x128xf32>,
    return
  }
  func.func @transform_0(%arg0: i32, %arg1: i32, %arg2: memref<32xi32, #tpu.memory_space<smem>>) -> (i32, i32, i32) {
    %c0_i32 = arith.constant 0 : i32
    %c0_i32_0 = arith.constant 0 : i32
    %c0_i32_1 = arith.constant 0 : i32
    return %arg0, %c0_i32, %c0_i32_0 : i32, i32, i32
  }
  func.func @transform_1(%arg0: i32, %arg1: i32, %arg2: memref<32xi32, #tpu.memory_space<smem>>) -> (i32, i32, i32, i32) {
    %c0_i32 = arith.constant 0 : i32
    %c0_i32_0 = arith.constant 0 : i32
    %c0_i32_1 = arith.constant 0 : i32
    return %arg0, %arg1, %c0_i32, %c0_i32_0 : i32, i32, i32, i32
  }
  func.func @transform_2(%arg0: i32, %arg1: i32, %arg2: memref<32xi32, #tpu.memory_space<smem>>) -> (i32, i32, i32) {
    %c0_i32 = arith.constant 0 : i32
    %c0_i32_0 = arith.constant 0 : i32
    %c0_i32_1 = arith.constant 0 : i32
    %c0_i32_2 = arith.constant 0 : i32
    return %c0_i32, %c0_i32_0, %c0_i32_1 : i32, i32, i32
  }
  func.func @transform_3(%arg0: i32, %arg1: i32, %arg2: memref<32xi32, #tpu.memory_space<smem>>) -> (i32, i32) {
    %c0_i32 = arith.constant 0 : i32
    %c0_i32_0 = arith.constant 0 : i32
    %c0_i32_1 = arith.constant 0 : i32
    return %c0_i32, %c0_i32_0 : i32, i32
  }
  func.func @transform_4(%arg0: i32, %arg1: i32, %arg2: memref<32xi32, #tpu.memory_space<smem>>) -> (i32, i32, i32) {
    %c0_i32 = arith.constant 0 : i32
    %c0_i32_0 = arith.constant 0 : i32
    return %arg0, %arg1, %c0_i32 : i32, i32, i32
  }
}

</mosaic_0001>

<llo_original>
// kernel: adaptive_temporal_conv.2
$region0: #{adaptive_temporal_conv.2}
  #allocation0 [shape = 'u32[]', space=smem, size = 0x4, offset = 0x4, fixed_abs, tag = 'smem constant byte address 0x4 - core index']
  #allocation1 [shape = 'u32[144,128]{1,0:T(1,128)}', space=vmem, size = 0x12000, scoped, tag = 'internal scratch']
  %s0 = inlined_call_operand.hbm [shape: f32[2,16,128], index: 0, kind: input, shape index: {}]
  %s1 = inlined_call_operand.vmem [shape: f32[2,1,16], index: 1, kind: output, shape index: {}]
  %s2 = sld [smem:[#allocation0]]
  $region41: #{adaptive_temporal_conv.2} parent=0
    _
  %s4 = ssub.s32 1, %s2
  %s5 = scalar_select 0, %s4, %s2
  $region1: #{adaptive_temporal_conv.2} parent=0
    #allocation2 [shape = 'u8[16384]{0}', space=vmem, size = 0x4000, scoped, tag = 'input window, operand 0']
    #allocation3 [shape = 's32[2]{0}', space=sflag, size = 0x8, scoped, tag = 'scoped memory for adaptive_temporal_conv.2']
    %6 = vsyncpa [#allocation3], 0
    %s7 = scalar_lea.sflag [#allocation3], 1
    %8 = vsyncpa %s7, 0
    loop: start=0, step=1, limit=4
    $region2: #{adaptive_temporal_conv.2} parent=1 // loop_pre_header
      _
    $region3: #{adaptive_temporal_conv.2} parent=1 // loop_header
      %s10 = sphi 0, %s14
      %p11 = scmp.ge.s32.totalorder %s10, 4
      %s20 = sphi 0, %s22
      %s23 = sphi 0, %s20
      %s24 = sphi 0, %s23
      %s40 = sphi 0, %s24
      %s46 = sphi 0, %s48
      %s49 = sphi 0, %s46
      %s50 = sphi 0, %s49
      %s66 = sphi 0, %s50
    $region4: #{adaptive_temporal_conv.2} parent=1 // loop_header_branch
      %13 = sbr.rel (%p11) target = $region8
    $region5: #{adaptive_temporal_conv.2} parent=1 // loop_body
      %s15 = ssub.s32 %s10, 1
      %s16 = ssub.s32 %s10, 2
      %s17 = sadd.s32 %s10, 1
      %s18 = ssub.s32 %s10, %s17
      %p19 = scmp.eq.s32.totalorder %s18, 0
      %s21 = sadd.s32 %s20, 1
      %s22 = scalar_select %p19, %s20, %s21
      %p25 = pneg %p19
      %p26 = scmp.eq.s32.totalorder %s10, 1
      %p27 = por %p25, %p26
      %p28 = scmp.ne.s32.totalorder %s20, %s23
      %p29 = scmp.eq.s32.totalorder %s10, 0
      %p30 = por %p28, %p29
      %p31 = scmp.ne.s32.totalorder %s20, %s23
      %p32 = scmp.eq.s32.totalorder %s15, 1
      %p33 = por %p31, %p32
      %p34 = scmp.ne.s32.totalorder %s23, %s24
      %p35 = scmp.eq.s32.totalorder %s15, 0
      %p36 = por %p34, %p35
      %p37 = scmp.ne.s32.totalorder %s23, %s24
      %p38 = scmp.eq.s32.totalorder %s16, 1
      %p39 = por %p37, %p38
      %p41 = scmp.ne.s32.totalorder %s24, %s40
      %p42 = scmp.eq.s32.totalorder %s16, 0
      %p43 = por %p41, %p42
      %s44 = ssub.s32 %s10, %s17
      %p45 = scmp.eq.s32.totalorder %s44, 0
      %s47 = sadd.s32 %s46, 1
      %s48 = scalar_select %p45, %s46, %s47
      %p51 = pneg %p45
      %p52 = scmp.eq.s32.totalorder %s10, 1
      %p53 = por %p51, %p52
      %p54 = scmp.ne.s32.totalorder %s46, %s49
      %p55 = scmp.eq.s32.totalorder %s10, 0
      %p56 = por %p54, %p55
      %p57 = scmp.ne.s32.totalorder %s46, %s49
      %p58 = scmp.eq.s32.totalorder %s15, 1
      %p59 = por %p57, %p58
      %p60 = scmp.ne.s32.totalorder %s49, %s50
      %p61 = scmp.eq.s32.totalorder %s15, 0
      %p62 = por %p60, %p61
      %p63 = scmp.ne.s32.totalorder %s49, %s50
      %p64 = scmp.eq.s32.totalorder %s16, 1
      %p65 = por %p63, %p64
      %p67 = scmp.ne.s32.totalorder %s50, %s66
      %p68 = scmp.eq.s32.totalorder %s16, 0
      %p69 = por %p67, %p68
      %p70 = scmp.le.s32.totalorder 1, %s10
      %p71 = scmp.lt.s32.totalorder %s10, 3
      %p72 = pnand %p70, %p71
      %p73 = pneg %p72
      // Predicated region
      $region9: #{adaptive_temporal_conv.2} parent=5 // pred_check
        _
      $region10: #{adaptive_temporal_conv.2} parent=5 // pred_check_branch
        %75 = sbr.rel (%p72) target = $region12
      $region11: #{adaptive_temporal_conv.2} parent=5 // pred_region
        %s76 = ssub.s32 %s10, 1
      $region12: #{adaptive_temporal_conv.2} parent=5 // pred_fallthru
        _
      %p77 = scmp.lt.s32.totalorder %s10, 2
      // Predicated region
      $region13: #{adaptive_temporal_conv.2} parent=5 // pred_check
        %p78 = pneg %p77
      $region14: #{adaptive_temporal_conv.2} parent=5 // pred_check_branch
        %80 = sbr.rel (%p78) target = $region16
      $region15: #{adaptive_temporal_conv.2} parent=5 // pred_region
        // Predicated region
        $region17: #{adaptive_temporal_conv.2} parent=15 // pred_check
          %p81 = pneg %p30
        $region18: #{adaptive_temporal_conv.2} parent=15 // pred_check_branch
          %83 = sbr.rel (%p81) target = $region20
        $region19: #{adaptive_temporal_conv.2} parent=15 // pred_region
          %s84 = sand.u32 %s20, 1
          %s85 = scalar_lea.sflag [#allocation3], %s84
          %s86 = sand.u32 %s20, 1
          %s87 = smul.addr %s86, 16
          %s88 = scalar_lea.vmem [#allocation2], %s87
          %s90 = ssub.s32 256, 256
          %91 = vsyncadd %s85, %s90
          %s92 = smul.addr %s10, 2
          %s93 = smul.addr %s92, 128
          %s94 = scalar_lea.hbm %s0, %s93
          %s95 = sshll.u32 %s88, 4
          %s96 = int_to_ptr.vmem [resolvable:$true] %s95
          %101 = dma.hbm_to_vmem [thread:$0]  %s94, 256, %s96, %s85, 128, 128, 8
        $region20: #{adaptive_temporal_conv.2} parent=15 // pred_fallthru
          _
      $region16: #{adaptive_temporal_conv.2} parent=5 // pred_fallthru
        _
      %p102 = scmp.le.s32.totalorder 1, %s10
      %p103 = scmp.lt.s32.totalorder %s10, 3
      %p104 = pnand %p102, %p103
      %p105 = pneg %p104
      // Predicated region
      $region21: #{adaptive_temporal_conv.2} parent=5 // pred_check
        _
      $region22: #{adaptive_temporal_conv.2} parent=5 // pred_check_branch
        %107 = sbr.rel (%p104) target = $region24
      $region23: #{adaptive_temporal_conv.2} parent=5 // pred_region
        %s108 = ssub.s32 %s10, 1
        %s109 = sand.u32 %s23, 1
        %s110 = scalar_lea.sflag [#allocation3], %s109
        %s111 = sand.u32 %s23, 1
        %s112 = smul.addr %s111, 16
        %s113 = scalar_lea.vmem [#allocation2], %s112
        // Predicated region
        $region25: #{adaptive_temporal_conv.2} parent=23 // pred_check
          %p114 = pneg %p36
        $region26: #{adaptive_temporal_conv.2} parent=23 // pred_check_branch
          %116 = sbr.rel (%p114) target = $region28
        $region27: #{adaptive_temporal_conv.2} parent=23 // pred_region
          %117 = dma.done %s110, 256
        $region28: #{adaptive_temporal_conv.2} parent=23 // pred_fallthru
          _
        %s118 = sand.u32 %s23, 1
        %s119 = scalar_lea.sflag [#allocation3], %s118
        %s120 = sand.u32 %s23, 1
        %s121 = smul.addr %s120, 16
        %s122 = scalar_lea.vmem [#allocation2], %s121
        %p123 = pneg %p36
        %p124 = pneg %p33
        %p125 = pneg %p62
        %p126 = pneg %p59
        %p127 = scmp.lt.s32.totalorder %s15, 1
        %s128 = scalar_select %p127, %s15, 1
        %s129 = scalar_lea.vmem %s1, %s128
        %p130 = scmp.lt.s32.totalorder %s15, 1
        %s131 = scalar_select %p130, %s15, 1
        %s132 = scalar_lea.vmem %s1, %s131
        %v133 = vld [vmem:[%s113] sm:$0xff]
        %v134 = vld [vmem:[%s113 + $0x8] sm:$0xff]
        %v135 = vmul.f32 %v133, %v133
        %v136 = vmul.f32 %v134, %v134
        %137 = vadd.xlane.f32.xlu0 %v135
        %v138 = vpop.xlane.xlu0 %137
        %139 = vadd.xlane.f32.xlu0 %v136
        %v140 = vpop.xlane.xlu0 %139
        %v141 = vadd.f32 %v138, 1e-12
        %v142 = vadd.f32 %v140, 1e-12
        %v143 = vrsqrt.pop %v141
        %v144 = vrsqrt.pop %v142
        %v145 = vmul.f32 %v133, %v143
        %v146 = vmul.f32 %v134, %v144
        %147 = vmatprep.subr.mxu0 0.0
        %148 = vmatpush1.xpose.msra.mxu0 0.0
        %149 = vmatprep.subr.mxu0 0.0
        %150 = vmatpush1.xpose.msra.mxu0 0.0
        %151 = vmatprep.subr.mxu0 0.0
        %152 = vmatpush1.xpose.msra.mxu0 0.0
        %153 = vmatprep.subr.mxu0 0.0
        %154 = vmatpush1.xpose.msra.mxu0 0.0
        %155 = vmatprep.subr.mxu0 0.0
        %156 = vmatpush1.xpose.msra.mxu0 0.0
        %157 = vmatprep.subr.mxu0 0.0
        %158 = vmatpush1.xpose.msra.mxu0 0.0
        %159 = vmatprep.subr.mxu0 0.0
        %160 = vmatpush1.xpose.msra.mxu0 0.0
        %161 = vmatprep.subr.mxu0 0.0
        %162 = vmatpush1.xpose.msra.mxu0 0.0
        %163 = vmatprep.subr.mxu0 0.0
        %164 = vmatpush1.xpose.msra.mxu0 0.0
        %165 = vmatprep.subr.mxu0 0.0
        %166 = vmatpush1.xpose.msra.mxu0 0.0
        %167 = vmatprep.subr.mxu0 0.0
        %168 = vmatpush1.xpose.msra.mxu0 0.0
        %169 = vmatprep.subr.mxu0 0.0
        %170 = vmatpush1.xpose.msra.mxu0 0.0
        %171 = vmatprep.subr.mxu0 0.0
        %172 = vmatpush1.xpose.msra.mxu0 0.0
        %173 = vmatprep.subr.mxu0 0.0
        %174 = vmatpush1.xpose.msra.mxu0 0.0
        %175 = vmatprep.subr.mxu0 0.0
        %176 = vmatpush1.xpose.msra.mxu0 %v146
        %177 = vmatprep.subr.mxu0 0.0
        %178 = vmatpush1.xpose.msra.mxu0 %v145
        %179 = vmatprep.subr.mxu0 0.0
        %180 = vmatpush2.xpose.msra.mxu0 0.0
        %181 = vmatprep.subr.mxu0 0.0
        %182 = vmatpush2.xpose.msra.mxu0 0.0
        %183 = vmatprep.subr.mxu0 0.0
        %184 = vmatpush2.xpose.msra.mxu0 0.0
        %185 = vmatprep.subr.mxu0 0.0
        %186 = vmatpush2.xpose.msra.mxu0 0.0
        %187 = vmatprep.subr.mxu0 0.0
        %188 = vmatpush2.xpose.msra.mxu0 0.0
        %189 = vmatprep.subr.mxu0 0.0
        %190 = vmatpush2.xpose.msra.mxu0 0.0
        %191 = vmatprep.subr.mxu0 0.0
        %192 = vmatpush2.xpose.msra.mxu0 0.0
        %193 = vmatprep.subr.mxu0 0.0
        %194 = vmatpush2.xpose.msra.mxu0 0.0
        %195 = vmatprep.subr.mxu0 0.0
        %196 = vmatpush2.xpose.msra.mxu0 0.0
        %197 = vmatprep.subr.mxu0 0.0
        %198 = vmatpush2.xpose.msra.mxu0 0.0
        %199 = vmatprep.subr.mxu0 0.0
        %200 = vmatpush2.xpose.msra.mxu0 0.0
        %201 = vmatprep.subr.mxu0 0.0
        %202 = vmatpush2.xpose.msra.mxu0 0.0
        %203 = vmatprep.subr.mxu0 0.0
        %204 = vmatpush2.xpose.msra.mxu0 0.0
        %205 = vmatprep.subr.mxu0 0.0
        %206 = vmatpush2.xpose.msra.mxu0 0.0
        %207 = vmatprep.subr.mxu0 0.0
        %208 = vmatpush2.xpose.msra.mxu0 0.0
        %209 = vmatprep.subr.mxu0 0.0
        %210 = vmatpush2.xpose.msra.mxu0 0.0
        %211 = vmatprep.mubr.f32.mxu0 0.0
        %212 = vmatmul.mubr.f32.gmra.mxu0 %v145
        %v213 = vpop.f32.mrf.mxu0
        %v214 = vadd.f32 0.0, %v213
        %v215 = vpop.f32.mrf.mxu0
        %216 = vmatprep.mubr.f32.mxu0 0.0
        %217 = vmatmul.mubr.f32.gmra.mxu0 %v146
        %v218 = vpop.f32.mrf.mxu0
        %v219 = vadd.f32 0.0, %v218
        %v220 = vpop.f32.mrf.mxu0
        %221 = vdwg.mxu0
        %v222 = vlaneseq
        %v223 = vshrl.u32 %v222, 7
        %v224 = vadd.s32 %v223, 8
        %v225 = vlaneseq
        %v226 = vand.u32 %v225, 127
        %v227 = vsub.s32 %v223, %v226
        %v228 = vsub.s32 %v224, %v226
        %vm229 = vcmp.le.s32.totalorder %v227, 8
        %vm230 = vcmp.le.s32.totalorder %v228, 8
        %vm231 = vcmp.ge.s32.totalorder %v227, 4294967289
        %vm232 = vcmp.ge.s32.totalorder %v228, 4294967289
        %vm233 = vmand %vm229, %vm231
        %vm234 = vmand %vm230, %vm232
        %vm235 = vcmp.ne.s32.totalorder %v227, 0
        %vm236 = vcmp.ne.s32.totalorder %v228, 0
        %vm237 = vmand %vm233, %vm235
        %vm238 = vmand %vm234, %vm236
        %vm239 = vcmp.ge.s32.totalorder %v227, 1
        %vm240 = vcmp.ge.s32.totalorder %v228, 1
        %vm241 = vmand %vm237, %vm239
        %vm242 = vmand %vm238, %vm240
        %v243 = vsel %vm237, %v214, -inf
        %v244 = vsel %vm238, %v219, -inf
        %vm245 = vcmask 130048
        %v246 = vsel %vm245, %v243, -inf
        %v247 = vsel %vm245, %v244, -inf
        %v248 = vmax.f32 %v246, %v247
        %v249 = vrot.slane %v248, 4
        %v250 = vmax.f32 %v248, %v249
        %v251 = vrot.slane %v250, 2
        %v252 = vmax.f32 %v250, %v251
        %v253 = vrot.slane %v252, 1
        %v254 = vmax.f32 %v252, %v253
        %v255 = vmax.f32 %v254, -1e+30
        %v256 = vsub.f32 %v243, %v255
        %v257 = vsub.f32 %v244, %v255
        %v258 = vmul.f32 %v256, 1.442695
        %v259 = vpow.pop %v258
        %v260 = vmul.f32 %v257, 1.442695
        %v261 = vpow.pop %v260
        %v262 = vsel %vm241, %v259, 0.0
        %v263 = vsel %vm242, %v261, 0.0
        %v264 = vsel %vm245, %v262, 0.0
        %v265 = vsel %vm245, %v263, 0.0
        %v266 = vadd.f32 %v264, %v265
        %v267 = vrot.slane %v266, 4
        %v268 = vadd.f32 %v266, %v267
        %v269 = vrot.slane %v268, 2
        %v270 = vadd.f32 %v268, %v269
        %v271 = vrot.slane %v270, 1
        %v272 = vadd.f32 %v270, %v271
        %v273 = vsel %vm245, %v259, 0.0
        %v274 = vsel %vm245, %v261, 0.0
        %v275 = vadd.f32 %v273, %v274
        %v276 = vrot.slane %v275, 4
        %v277 = vadd.f32 %v275, %v276
        %v278 = vrot.slane %v277, 2
        %v279 = vadd.f32 %v277, %v278
        %v280 = vrot.slane %v279, 1
        %v281 = vadd.f32 %v279, %v280
        %v282 = vmax.f32 %v281, 1e-30
        %v283 = vrcp.pop %v282
        %v284 = vmul.f32 %v272, %v283
        %vm285 = vcmask 122880
        %286 = vst.msk [vmem:[%s132] sm:$0x1] %vm285, %v284
        %p287 = scmp.lt.s32.totalorder %s15, 1
        %s288 = scalar_select %p287, %s15, 1
        %s289 = scalar_lea.vmem %s1, %s288
        // Predicated region
        $region29: #{adaptive_temporal_conv.2} parent=23 // pred_check
          %p290 = pneg %p59
        $region30: #{adaptive_temporal_conv.2} parent=23 // pred_check_branch
          %292 = sbr.rel (%p290) target = $region32
        $region31: #{adaptive_temporal_conv.2} parent=23 // pred_region
          _
        $region32: #{adaptive_temporal_conv.2} parent=23 // pred_fallthru
          _
      $region24: #{adaptive_temporal_conv.2} parent=5 // pred_fallthru
        _
      %p293 = scmp.le.s32.totalorder 2, %s10
      // Predicated region
      $region33: #{adaptive_temporal_conv.2} parent=5 // pred_check
        %p294 = pneg %p293
      $region34: #{adaptive_temporal_conv.2} parent=5 // pred_check_branch
        %296 = sbr.rel (%p294) target = $region36
      $region35: #{adaptive_temporal_conv.2} parent=5 // pred_region
        %s297 = ssub.s32 %s10, 2
        // Predicated region
        $region37: #{adaptive_temporal_conv.2} parent=35 // pred_check
          %p298 = pneg %p65
        $region38: #{adaptive_temporal_conv.2} parent=35 // pred_check_branch
          %300 = sbr.rel (%p298) target = $region40
        $region39: #{adaptive_temporal_conv.2} parent=35 // pred_region
          %p301 = scmp.lt.s32.totalorder %s16, 1
          %s302 = scalar_select %p301, %s16, 1
          %s303 = scalar_lea.vmem %s1, %s302
        $region40: #{adaptive_temporal_conv.2} parent=35 // pred_fallthru
          _
      $region36: #{adaptive_temporal_conv.2} parent=5 // pred_fallthru
        _
    $region6: #{adaptive_temporal_conv.2} parent=1 // loop_footer
      %s14 = sadd.s32 1, %s10
    $region7: #{adaptive_temporal_conv.2} parent=1 // loop_footer_branch
      %9 = sbr.rel target = $region3
    $region8: #{adaptive_temporal_conv.2} parent=1 // loop_exit
      _
    %304 = vsyncpa [#allocation3], 1
    %s305 = scalar_lea.sflag [#allocation3], 1
    %306 = vsyncpa %s305, 1

// kernel: adaptive_temporal_conv.3
$region0: #{adaptive_temporal_conv.3}
  #allocation0 [shape = 'u32[]', space=smem, size = 0x4, offset = 0x4, fixed_abs, tag = 'smem constant byte address 0x4 - core index']
  #allocation1 [shape = 'u32[144,128]{1,0:T(1,128)}', space=vmem, size = 0x12000, scoped, tag = 'internal scratch']
  #allocation2 [shape = 'f32[16,8,128]{2,1,0:T(8,128)}', space=vmem, size = 0x10000, scoped, tag = 'scratch operand']
  #allocation3 [shape = 's32[1]{0}', space=sflag, size = 0x4, scoped, tag = 'scoped memory for adaptive_temporal_conv.3']
  #allocation4 [shape = 'u8[512]{0}', space=smem, size = 0x200, scoped, tag = 'prefetched SMEM operand 0']
  %s0 = inlined_call_operand.vmem [shape: s32[32], index: 0, kind: input, shape index: {}]
  %s1 = inlined_call_operand.vmem [shape: f32[2,16,128], index: 1, kind: input, shape index: {}]
  %s2 = inlined_call_operand.vmem [shape: s32[2,16,1,2], index: 2, kind: input, shape index: {}]
  %s3 = inlined_call_operand.vmem [shape: f32[9,8,128], index: 3, kind: input, shape index: {}]
  %s4 = inlined_call_operand.vmem [shape: f32[12,128], index: 4, kind: input, shape index: {}]
  %s5 = inlined_call_operand.hbm [shape: f32[2,16,128], index: 5, kind: output, shape index: {}]
  %s6 = sld [smem:[#allocation0]]
  $region49: #{adaptive_temporal_conv.3} parent=0
    _
  %s8 = ssub.s32 1, %s6
  %s9 = scalar_select 0, %s8, %s6
  %s10 = sshll.u32 %s0, 4
  %s11 = int_to_ptr.vmem [resolvable:$true] %s10
  %13 = dma.vmem_to_smem %s11, 16, [#allocation4], [#allocation3]
  %14 = dma.done [#allocation3], 16
  %15 = sfence
  $region1: #{adaptive_temporal_conv.3} parent=0
    #allocation5 [shape = 'u8[16384]{0}', space=vmem, size = 0x4000, scoped, tag = 'output window, operand 0']
    #allocation6 [shape = 's32[2]{0}', space=sflag, size = 0x8, scoped, tag = 'scoped memory for adaptive_temporal_conv.3']
    %16 = vsyncpa [#allocation6], 0
    %s17 = scalar_lea.sflag [#allocation6], 1
    %18 = vsyncpa %s17, 0
    loop: start=0, step=1, limit=4
    $region2: #{adaptive_temporal_conv.3} parent=1 // loop_pre_header
      _
    $region3: #{adaptive_temporal_conv.3} parent=1 // loop_header
      %s20 = sphi 0, %s24
      %p21 = scmp.ge.s32.totalorder %s20, 4
      %s27 = sphi 0, %s39
      %s28 = sphi 0, %s35
      %s29 = sphi 0, %s27
      %s30 = sphi 0, %s28
      %s31 = sphi 0, %s29
      %s32 = sphi 0, %s30
      %s42 = sphi 0, %s44
      %s45 = sphi 0, %s42
      %s46 = sphi 0, %s45
      %s62 = sphi 0, %s46
      %s70 = sphi 0, %s72
      %s73 = sphi 0, %s70
      %s74 = sphi 0, %s73
      %s90 = sphi 0, %s74
      %s94 = sphi 0, %s94
      %s96 = sphi 0, %s94
      %s97 = sphi 0, %s96
      %s111 = sphi 0, %s97
      %s115 = sphi 0, %s115
      %s117 = sphi 0, %s115
      %s118 = sphi 0, %s117
      %s132 = sphi 0, %s118
      %s140 = sphi 0, %s142
      %s143 = sphi 0, %s140
      %s144 = sphi 0, %s143
      %s160 = sphi 0, %s144
    $region4: #{adaptive_temporal_conv.3} parent=1 // loop_header_branch
      %23 = sbr.rel (%p21) target = $region8
    $region5: #{adaptive_temporal_conv.3} parent=1 // loop_body
      %s25 = ssub.s32 %s20, 1
      %s26 = ssub.s32 %s20, 2
      %s33 = sadd.s32 1, %s28
      %p34 = scmp.ge.s32.totalorder %s33, 1
      %s35 = scalar_select %p34, 0, %s33
      %s36 = sadd.s32 1, %s27
      %s37 = scalar_select %p34, %s36, %s27
      %p38 = scmp.ge.s32.totalorder %s37, 2
      %s39 = scalar_select %p38, 0, %s37
      %s40 = ssub.s32 %s27, %s39
      %p41 = scmp.eq.s32.totalorder %s40, 0
      %s43 = sadd.s32 %s42, 1
      %s44 = scalar_select %p41, %s42, %s43
      %p47 = pneg %p41
      %p48 = scmp.eq.s32.totalorder %s20, 1
      %p49 = por %p47, %p48
      %p50 = scmp.ne.s32.totalorder %s42, %s45
      %p51 = scmp.eq.s32.totalorder %s20, 0
      %p52 = por %p50, %p51
      %p53 = scmp.ne.s32.totalorder %s42, %s45
      %p54 = scmp.eq.s32.totalorder %s25, 1
      %p55 = por %p53, %p54
      %p56 = scmp.ne.s32.totalorder %s45, %s46
      %p57 = scmp.eq.s32.totalorder %s25, 0
      %p58 = por %p56, %p57
      %p59 = scmp.ne.s32.totalorder %s45, %s46
      %p60 = scmp.eq.s32.totalorder %s26, 1
      %p61 = por %p59, %p60
      %p63 = scmp.ne.s32.totalorder %s46, %s62
      %p64 = scmp.eq.s32.totalorder %s26, 0
      %p65 = por %p63, %p64
      %s66 = ssub.s32 %s27, %s39
      %s67 = ssub.s32 %s28, %s35
      %s68 = sor.u32 %s66, %s67
      %p69 = scmp.eq.s32.totalorder %s68, 0
      %s71 = sadd.s32 %s70, 1
      %s72 = scalar_select %p69, %s70, %s71
      %p75 = pneg %p69
      %p76 = scmp.eq.s32.totalorder %s20, 1
      %p77 = por %p75, %p76
      %p78 = scmp.ne.s32.totalorder %s70, %s73
      %p79 = scmp.eq.s32.totalorder %s20, 0
      %p80 = por %p78, %p79
      %p81 = scmp.ne.s32.totalorder %s70, %s73
      %p82 = scmp.eq.s32.totalorder %s25, 1
      %p83 = por %p81, %p82
      %p84 = scmp.ne.s32.totalorder %s73, %s74
      %p85 = scmp.eq.s32.totalorder %s25, 0
      %p86 = por %p84, %p85
      %p87 = scmp.ne.s32.totalorder %s73, %s74
      %p88 = scmp.eq.s32.totalorder %s26, 1
      %p89 = por %p87, %p88
      %p91 = scmp.ne.s32.totalorder %s74, %s90
      %p92 = scmp.eq.s32.totalorder %s26, 0
      %p93 = por %p91, %p92
      %s95 = sadd.s32 %s94, 1
      %p98 = scmp.eq.s32.totalorder %s20, 1
      %p99 = scmp.ne.s32.totalorder %s94, %s96
      %p100 = scmp.eq.s32.totalorder %s20, 0
      %p101 = por %p99, %p100
      %p102 = scmp.ne.s32.totalorder %s94, %s96
      %p103 = scmp.eq.s32.totalorder %s25, 1
      %p104 = por %p102, %p103
      %p105 = scmp.ne.s32.totalorder %s96, %s97
      %p106 = scmp.eq.s32.totalorder %s25, 0
      %p107 = por %p105, %p106
      %p108 = scmp.ne.s32.totalorder %s96, %s97
      %p109 = scmp.eq.s32.totalorder %s26, 1
      %p110 = por %p108, %p109
      %p112 = scmp.ne.s32.totalorder %s97, %s111
      %p113 = scmp.eq.s32.totalorder %s26, 0
      %p114 = por %p112, %p113
      %s116 = sadd.s32 %s115, 1
      %p119 = scmp.eq.s32.totalorder %s20, 1
      %p120 = scmp.ne.s32.totalorder %s115, %s117
      %p121 = scmp.eq.s32.totalorder %s20, 0
      %p122 = por %p120, %p121
      %p123 = scmp.ne.s32.totalorder %s115, %s117
      %p124 = scmp.eq.s32.totalorder %s25, 1
      %p125 = por %p123, %p124
      %p126 = scmp.ne.s32.totalorder %s117, %s118
      %p127 = scmp.eq.s32.totalorder %s25, 0
      %p128 = por %p126, %p127
      %p129 = scmp.ne.s32.totalorder %s117, %s118
      %p130 = scmp.eq.s32.totalorder %s26, 1
      %p131 = por %p129, %p130
      %p133 = scmp.ne.s32.totalorder %s118, %s132
      %p134 = scmp.eq.s32.totalorder %s26, 0
      %p135 = por %p133, %p134
      %s136 = ssub.s32 %s27, %s39
      %s137 = ssub.s32 %s28, %s35
      %s138 = sor.u32 %s136, %s137
      %p139 = scmp.eq.s32.totalorder %s138, 0
      %s141 = sadd.s32 %s140, 1
      %s142 = scalar_select %p139, %s140, %s141
      %p145 = pneg %p139
      %p146 = scmp.eq.s32.totalorder %s20, 1
      %p147 = por %p145, %p146
      %p148 = scmp.ne.s32.totalorder %s140, %s143
      %p149 = scmp.eq.s32.totalorder %s20, 0
      %p150 = por %p148, %p149
      %p151 = scmp.ne.s32.totalorder %s140, %s143
      %p152 = scmp.eq.s32.totalorder %s25, 1
      %p153 = por %p151, %p152
      %p154 = scmp.ne.s32.totalorder %s143, %s144
      %p155 = scmp.eq.s32.totalorder %s25, 0
      %p156 = por %p154, %p155
      %p157 = scmp.ne.s32.totalorder %s143, %s144
      %p158 = scmp.eq.s32.totalorder %s26, 1
      %p159 = por %p157, %p158
      %p161 = scmp.ne.s32.totalorder %s144, %s160
      %p162 = scmp.eq.s32.totalorder %s26, 0
      %p163 = por %p161, %p162
      %p164 = scmp.le.s32.totalorder 1, %s20
      %p165 = scmp.lt.s32.totalorder %s20, 3
      %p166 = pnand %p164, %p165
      %p167 = pneg %p166
      // Predicated region
      $region9: #{adaptive_temporal_conv.3} parent=5 // pred_check
        _
      $region10: #{adaptive_temporal_conv.3} parent=5 // pred_check_branch
        %169 = sbr.rel (%p166) target = $region12
      $region11: #{adaptive_temporal_conv.3} parent=5 // pred_region
        %s170 = ssub.s32 %s20, 1
        // Predicated region
        $region13: #{adaptive_temporal_conv.3} parent=11 // pred_check
          %p171 = pneg %p107
        $region14: #{adaptive_temporal_conv.3} parent=11 // pred_check_branch
          %173 = sbr.rel (%p171) target = $region16
        $region15: #{adaptive_temporal_conv.3} parent=11 // pred_region
          _
        $region16: #{adaptive_temporal_conv.3} parent=11 // pred_fallthru
          _
        // Predicated region
        $region17: #{adaptive_temporal_conv.3} parent=11 // pred_check
          %p174 = pneg %p128
        $region18: #{adaptive_temporal_conv.3} parent=11 // pred_check_branch
          %176 = sbr.rel (%p174) target = $region20
        $region19: #{adaptive_temporal_conv.3} parent=11 // pred_region
          _
        $region20: #{adaptive_temporal_conv.3} parent=11 // pred_fallthru
          _
      $region12: #{adaptive_temporal_conv.3} parent=5 // pred_fallthru
        _
      %p177 = scmp.lt.s32.totalorder %s20, 2
      // Predicated region
      $region21: #{adaptive_temporal_conv.3} parent=5 // pred_check
        %p178 = pneg %p177
      $region22: #{adaptive_temporal_conv.3} parent=5 // pred_check_branch
        %180 = sbr.rel (%p178) target = $region24
      $region23: #{adaptive_temporal_conv.3} parent=5 // pred_region
        // Predicated region
        $region25: #{adaptive_temporal_conv.3} parent=23 // pred_check
          %p181 = pneg %p52
        $region26: #{adaptive_temporal_conv.3} parent=23 // pred_check_branch
          %183 = sbr.rel (%p181) target = $region28
        $region27: #{adaptive_temporal_conv.3} parent=23 // pred_region
          %p184 = scmp.lt.s32.totalorder %s27, 1
          %s185 = scalar_select %p184, %s27, 1
          %s186 = smul.addr %s185, 2
          %s187 = smul.addr %s186, 8
          %s188 = scalar_lea.vmem %s1, %s187
        $region28: #{adaptive_temporal_conv.3} parent=23 // pred_fallthru
          _
        // Predicated region
        $region29: #{adaptive_temporal_conv.3} parent=23 // pred_check
          %p189 = pneg %p80
        $region30: #{adaptive_temporal_conv.3} parent=23 // pred_check_branch
          %191 = sbr.rel (%p189) target = $region32
        $region31: #{adaptive_temporal_conv.3} parent=23 // pred_region
          %s192 = smul.u32 16, %s28
          %p193 = scmp.lt.s32.totalorder %s27, 1
          %s194 = scalar_select %p193, %s27, 1
          %p195 = scmp.lt.s32.totalorder %s192, 15
          %s196 = scalar_select %p195, %s192, 15
          %s197 = smul.addr %s194, 16
          %s198 = sadd.s32 %s196, %s197
          %s199 = scalar_lea.vmem %s2, %s198
          %s200 = smul.u32 16, %s28
        $region32: #{adaptive_temporal_conv.3} parent=23 // pred_fallthru
          _
      $region24: #{adaptive_temporal_conv.3} parent=5 // pred_fallthru
        _
      %p201 = scmp.le.s32.totalorder 1, %s20
      %p202 = scmp.lt.s32.totalorder %s20, 3
      %p203 = pnand %p201, %p202
      %p204 = pneg %p203
      // Predicated region
      $region33: #{adaptive_temporal_conv.3} parent=5 // pred_check
        _
      $region34: #{adaptive_temporal_conv.3} parent=5 // pred_check_branch
        %206 = sbr.rel (%p203) target = $region36
      $region35: #{adaptive_temporal_conv.3} parent=5 // pred_region
        %s207 = ssub.s32 %s20, 1
        %p208 = scmp.lt.s32.totalorder %s29, 1
        %s209 = scalar_select %p208, %s29, 1
        %s210 = smul.addr %s209, 2
        %s211 = smul.addr %s210, 8
        %s212 = scalar_lea.vmem %s1, %s211
        %p213 = pneg %p58
        %p214 = pneg %p55
        %s215 = smul.u32 16, %s30
        %p216 = scmp.lt.s32.totalorder %s29, 1
        %s217 = scalar_select %p216, %s29, 1
        %p218 = scmp.lt.s32.totalorder %s215, 15
        %s219 = scalar_select %p218, %s215, 15
        %s220 = smul.addr %s217, 16
        %s221 = sadd.s32 %s219, %s220
        %s222 = scalar_lea.vmem %s2, %s221
        %p223 = pneg %p86
        %p224 = pneg %p83
        %p225 = pneg %p107
        %p226 = pneg %p104
        %p227 = pneg %p128
        %p228 = pneg %p125
        %p229 = pneg %p156
        %p230 = pneg %p153
        %s231 = sand.u32 %s143, 1
        %s232 = scalar_lea.sflag [#allocation6], %s231
        %s233 = sand.u32 %s143, 1
        %s234 = smul.addr %s233, 16
        %s235 = scalar_lea.vmem [#allocation5], %s234
        %p236 = scmp.lt.s32.totalorder %s29, 1
        %s237 = scalar_select %p236, %s29, 1
        %s238 = smul.addr %s237, 2
        %s239 = smul.addr %s238, 8
        %s240 = scalar_lea.vmem %s1, %s239
        %s241 = smul.u32 16, %s30
        %p242 = scmp.lt.s32.totalorder %s29, 1
        %s243 = scalar_select %p242, %s29, 1
        %p244 = scmp.lt.s32.totalorder %s241, 15
        %s245 = scalar_select %p244, %s241, 15
        %s246 = smul.addr %s243, 16
        %s247 = sadd.s32 %s245, %s246
        %s248 = scalar_lea.vmem %s2, %s247
        %s249 = smul.u32 16, %s30
        %s250 = smul.u32 2, %s30
        %s251 = smul.u32 %s30, 16
        %s252 = smul.u32 %s29, 16
        %s253 = sadd.s32 %s252, %s251
        %s254 = sld [smem:[#allocation4 + %s253]]
        %s255 = ssub.s32 %s254, %s251
        %s256 = sadd.s32 %s255, 7
        %s257 = scalar_lea.vmem %s240, %s254
        %v258 = vld [vmem:[%s257] sm:$0xff]
        %s259 = smul.u32 %s256, 8
        %s260 = scalar_lea.vmem %s3, %s259
        %v261 = vld [vmem:[%s260] sm:$0xff]
        %v262 = vadd.f32 %v258, %v261
        %263 = vst [vmem:[#allocation2] sm:$0xff] %v262
        %s264 = sadd.s32 %s253, 1
        %s265 = sld [smem:[#allocation4 + %s264]]
        %s266 = sadd.s32 %s251, 1
        %s267 = ssub.s32 %s265, %s266
        %s268 = sadd.s32 %s267, 7
        %s269 = scalar_lea.vmem %s240, %s265
        %v270 = vld [vmem:[%s269] sm:$0xff]
        %s271 = smul.u32 %s268, 8
        %s272 = scalar_lea.vmem %s3, %s271
        %v273 = vld [vmem:[%s272] sm:$0xff]
        %v274 = vadd.f32 %v270, %v273
        %s275 = scalar_lea.vmem [#allocation2], 8
        %276 = vst [vmem:[%s275] sm:$0xff] %v274
        %s277 = sadd.s32 %s253, 2
        %s278 = sld [smem:[#allocation4 + %s277]]
        %s279 = sadd.s32 %s251, 2
        %s280 = ssub.s32 %s278, %s279
        %s281 = sadd.s32 %s280, 7
        %s282 = scalar_lea.vmem %s240, %s278
        %v283 = vld [vmem:[%s282] sm:$0xff]
        %s284 = smul.u32 %s281, 8
        %s285 = scalar_lea.vmem %s3, %s284
        %v286 = vld [vmem:[%s285] sm:$0xff]
        %v287 = vadd.f32 %v283, %v286
        %s288 = scalar_lea.vmem [#allocation2], 16
        %289 = vst [vmem:[%s288] sm:$0xff] %v287
        %s290 = sadd.s32 %s253, 3
        %s291 = sld [smem:[#allocation4 + %s290]]
        %s292 = sadd.s32 %s251, 3
        %s293 = ssub.s32 %s291, %s292
        %s294 = sadd.s32 %s293, 7
        %s295 = scalar_lea.vmem %s240, %s291
        %v296 = vld [vmem:[%s295] sm:$0xff]
        %s297 = smul.u32 %s294, 8
        %s298 = scalar_lea.vmem %s3, %s297
        %v299 = vld [vmem:[%s298] sm:$0xff]
        %v300 = vadd.f32 %v296, %v299
        %s301 = scalar_lea.vmem [#allocation2], 24
        %302 = vst [vmem:[%s301] sm:$0xff] %v300
        %s303 = sadd.s32 %s253, 4
        %s304 = sld [smem:[#allocation4 + %s303]]
        %s305 = sadd.s32 %s251, 4
        %s306 = ssub.s32 %s304, %s305
        %s307 = sadd.s32 %s306, 7
        %s308 = scalar_lea.vmem %s240, %s304
        %v309 = vld [vmem:[%s308] sm:$0xff]
        %s310 = smul.u32 %s307, 8
        %s311 = scalar_lea.vmem %s3, %s310
        %v312 = vld [vmem:[%s311] sm:$0xff]
        %v313 = vadd.f32 %v309, %v312
        %s314 = scalar_lea.vmem [#allocation2], 32
        %315 = vst [vmem:[%s314] sm:$0xff] %v313
        %s316 = sadd.s32 %s253, 5
        %s317 = sld [smem:[#allocation4 + %s316]]
        %s318 = sadd.s32 %s251, 5
        %s319 = ssub.s32 %s317, %s318
        %s320 = sadd.s32 %s319, 7
        %s321 = scalar_lea.vmem %s240, %s317
        %v322 = vld [vmem:[%s321] sm:$0xff]
        %s323 = smul.u32 %s320, 8
        %s324 = scalar_lea.vmem %s3, %s323
        %v325 = vld [vmem:[%s324] sm:$0xff]
        %v326 = vadd.f32 %v322, %v325
        %s327 = scalar_lea.vmem [#allocation2], 40
        %328 = vst [vmem:[%s327] sm:$0xff] %v326
        %s329 = sadd.s32 %s253, 6
        %s330 = sld [smem:[#allocation4 + %s329]]
        %s331 = sadd.s32 %s251, 6
        %s332 = ssub.s32 %s330, %s331
        %s333 = sadd.s32 %s332, 7
        %s334 = scalar_lea.vmem %s240, %s330
        %v335 = vld [vmem:[%s334] sm:$0xff]
        %s336 = smul.u32 %s333, 8
        %s337 = scalar_lea.vmem %s3, %s336
        %v338 = vld [vmem:[%s337] sm:$0xff]
        %v339 = vadd.f32 %v335, %v338
        %s340 = scalar_lea.vmem [#allocation2], 48
        %341 = vst [vmem:[%s340] sm:$0xff] %v339
        %s342 = sadd.s32 %s253, 7
        %s343 = sld [smem:[#allocation4 + %s342]]
        %s344 = sadd.s32 %s251, 7
        %s345 = ssub.s32 %s343, %s344
        %s346 = sadd.s32 %s345, 7
        %s347 = scalar_lea.vmem %s240, %s343
        %v348 = vld [vmem:[%s347] sm:$0xff]
        %s349 = smul.u32 %s346, 8
        %s350 = scalar_lea.vmem %s3, %s349
        %v351 = vld [vmem:[%s350] sm:$0xff]
        %v352 = vadd.f32 %v348, %v351
        %s353 = scalar_lea.vmem [#allocation2], 56
        %354 = vst [vmem:[%s353] sm:$0xff] %v352
        %s355 = sadd.s32 %s253, 8
        %s356 = sld [smem:[#allocation4 + %s355]]
        %s357 = sadd.s32 %s251, 8
        %s358 = ssub.s32 %s356, %s357
        %s359 = sadd.s32 %s358, 7
        %s360 = scalar_lea.vmem %s240, %s356
        %v361 = vld [vmem:[%s360] sm:$0xff]
        %s362 = smul.u32 %s359, 8
        %s363 = scalar_lea.vmem %s3, %s362
        %v364 = vld [vmem:[%s363] sm:$0xff]
        %v365 = vadd.f32 %v361, %v364
        %s366 = scalar_lea.vmem [#allocation2], 64
        %367 = vst [vmem:[%s366] sm:$0xff] %v365
        %s368 = sadd.s32 %s253, 9
        %s369 = sld [smem:[#allocation4 + %s368]]
        %s370 = sadd.s32 %s251, 9
        %s371 = ssub.s32 %s369, %s370
        %s372 = sadd.s32 %s371, 7
        %s373 = scalar_lea.vmem %s240, %s369
        %v374 = vld [vmem:[%s373] sm:$0xff]
        %s375 = smul.u32 %s372, 8
        %s376 = scalar_lea.vmem %s3, %s375
        %v377 = vld [vmem:[%s376] sm:$0xff]
        %v378 = vadd.f32 %v374, %v377
        %s379 = scalar_lea.vmem [#allocation2], 72
        %380 = vst [vmem:[%s379] sm:$0xff] %v378
        %s381 = sadd.s32 %s253, 10
        %s382 = sld [smem:[#allocation4 + %s381]]
        %s383 = sadd.s32 %s251, 10
        %s384 = ssub.s32 %s382, %s383
        %s385 = sadd.s32 %s384, 7
        %s386 = scalar_lea.vmem %s240, %s382
        %v387 = vld [vmem:[%s386] sm:$0xff]
        %s388 = smul.u32 %s385, 8
        %s389 = scalar_lea.vmem %s3, %s388
        %v390 = vld [vmem:[%s389] sm:$0xff]
        %v391 = vadd.f32 %v387, %v390
        %s392 = scalar_lea.vmem [#allocation2], 80
        %393 = vst [vmem:[%s392] sm:$0xff] %v391
        %s394 = sadd.s32 %s253, 11
        %s395 = sld [smem:[#allocation4 + %s394]]
        %s396 = sadd.s32 %s251, 11
        %s397 = ssub.s32 %s395, %s396
        %s398 = sadd.s32 %s397, 7
        %s399 = scalar_lea.vmem %s240, %s395
        %v400 = vld [vmem:[%s399] sm:$0xff]
        %s401 = smul.u32 %s398, 8
        %s402 = scalar_lea.vmem %s3, %s401
        %v403 = vld [vmem:[%s402] sm:$0xff]
        %v404 = vadd.f32 %v400, %v403
        %s405 = scalar_lea.vmem [#allocation2], 88
        %406 = vst [vmem:[%s405] sm:$0xff] %v404
        %s407 = sadd.s32 %s253, 12
        %s408 = sld [smem:[#allocation4 + %s407]]
        %s409 = sadd.s32 %s251, 12
        %s410 = ssub.s32 %s408, %s409
        %s411 = sadd.s32 %s410, 7
        %s412 = scalar_lea.vmem %s240, %s408
        %v413 = vld [vmem:[%s412] sm:$0xff]
        %s414 = smul.u32 %s411, 8
        %s415 = scalar_lea.vmem %s3, %s414
        %v416 = vld [vmem:[%s415] sm:$0xff]
        %v417 = vadd.f32 %v413, %v416
        %s418 = scalar_lea.vmem [#allocation2], 96
        %419 = vst [vmem:[%s418] sm:$0xff] %v417
        %s420 = sadd.s32 %s253, 13
        %s421 = sld [smem:[#allocation4 + %s420]]
        %s422 = sadd.s32 %s251, 13
        %s423 = ssub.s32 %s421, %s422
        %s424 = sadd.s32 %s423, 7
        %s425 = scalar_lea.vmem %s240, %s421
        %v426 = vld [vmem:[%s425] sm:$0xff]
        %s427 = smul.u32 %s424, 8
        %s428 = scalar_lea.vmem %s3, %s427
        %v429 = vld [vmem:[%s428] sm:$0xff]
        %v430 = vadd.f32 %v426, %v429
        %s431 = scalar_lea.vmem [#allocation2], 104
        %432 = vst [vmem:[%s431] sm:$0xff] %v430
        %s433 = sadd.s32 %s253, 14
        %s434 = sld [smem:[#allocation4 + %s433]]
        %s435 = sadd.s32 %s251, 14
        %s436 = ssub.s32 %s434, %s435
        %s437 = sadd.s32 %s436, 7
        %s438 = scalar_lea.vmem %s240, %s434
        %v439 = vld [vmem:[%s438] sm:$0xff]
        %s440 = smul.u32 %s437, 8
        %s441 = scalar_lea.vmem %s3, %s440
        %v442 = vld [vmem:[%s441] sm:$0xff]
        %v443 = vadd.f32 %v439, %v442
        %s444 = scalar_lea.vmem [#allocation2], 112
        %445 = vst [vmem:[%s444] sm:$0xff] %v443
        %s446 = sadd.s32 %s253, 15
        %s447 = sld [smem:[#allocation4 + %s446]]
        %s448 = sadd.s32 %s251, 15
        %s449 = ssub.s32 %s447, %s448
        %s450 = sadd.s32 %s449, 7
        %s451 = scalar_lea.vmem %s240, %s447
        %v452 = vld [vmem:[%s451] sm:$0xff]
        %s453 = smul.u32 %s450, 8
        %s454 = scalar_lea.vmem %s3, %s453
        %v455 = vld [vmem:[%s454] sm:$0xff]
        %v456 = vadd.f32 %v452, %v455
        %s457 = scalar_lea.vmem [#allocation2], 120
        %458 = vst [vmem:[%s457] sm:$0xff] %v456
        %v459 = vld [vmem:[%s4] sm:$0xff]
        %v460 = vld [vmem:[%s4 + $0x8] sm:$0xf]
        %v461 = vld [vmem:[#allocation2] sm:$0xff]
        %v462 = vld [vmem:[#allocation2 + $0x8] sm:$0xff]
        %v463 = vld [vmem:[#allocation2 + $0x10] sm:$0xff]
        %v464 = vld [vmem:[#allocation2 + $0x18] sm:$0xff]
        %v465 = vld [vmem:[#allocation2 + $0x20] sm:$0xff]
        %v466 = vld [vmem:[#allocation2 + $0x28] sm:$0xff]
        %v467 = vld [vmem:[#allocation2 + $0x30] sm:$0xff]
        %v468 = vld [vmem:[#allocation2 + $0x38] sm:$0xff]
        %v469 = vld [vmem:[#allocation2 + $0x40] sm:$0xff]
        %v470 = vld [vmem:[#allocation2 + $0x48] sm:$0xff]
        %v471 = vld [vmem:[#allocation2 + $0x50] sm:$0xff]
        %v472 = vld [vmem:[#allocation2 + $0x58] sm:$0xff]
        %v473 = vld [vmem:[#allocation2 + $0x60] sm:$0xff]
        %v474 = vld [vmem:[#allocation2 + $0x68] sm:$0xff]
        %v475 = vld [vmem:[#allocation2 + $0x70] sm:$0xff]
        %v476 = vld [vmem:[#allocation2 + $0x78] sm:$0xff]
        %v477 = vlaneseq
        %v478 = vshrl.u32 %v477, 7
        %v479 = vsub.s32 0, %v478
        %v480 = vrot.slane %v459, %v479
        %v481 = vmul.f32 %v461, %v480
        %v482 = vmul.f32 %v462, %v480
        %v483 = vmul.f32 %v463, %v480
        %v484 = vmul.f32 %v464, %v480
        %v485 = vmul.f32 %v465, %v480
        %v486 = vmul.f32 %v466, %v480
        %v487 = vmul.f32 %v467, %v480
        %v488 = vmul.f32 %v468, %v480
        %v489 = vmul.f32 %v469, %v480
        %v490 = vmul.f32 %v470, %v480
        %v491 = vmul.f32 %v471, %v480
        %v492 = vmul.f32 %v472, %v480
        %v493 = vmul.f32 %v473, %v480
        %v494 = vmul.f32 %v474, %v480
        %v495 = vmul.f32 %v475, %v480
        %v496 = vmul.f32 %v476, %v480
        %v497 = vlaneseq
        %v498 = vshrl.u32 %v497, 7
        %v499 = vsub.s32 1, %v498
        %v500 = vrot.slane %v459, %v499
        %v501 = vmul.f32 %v461, %v500
        %v502 = vmul.f32 %v462, %v500
        %v503 = vmul.f32 %v463, %v500
        %v504 = vmul.f32 %v464, %v500
        %v505 = vmul.f32 %v465, %v500
        %v506 = vmul.f32 %v466, %v500
        %v507 = vmul.f32 %v467, %v500
        %v508 = vmul.f32 %v468, %v500
        %v509 = vmul.f32 %v469, %v500
        %v510 = vmul.f32 %v470, %v500
        %v511 = vmul.f32 %v471, %v500
        %v512 = vmul.f32 %v472, %v500
        %v513 = vmul.f32 %v473, %v500
        %v514 = vmul.f32 %v474, %v500
        %v515 = vmul.f32 %v475, %v500
        %v516 = vmul.f32 %v476, %v500
        %v533 = vrot.slane %v501, 1
        %v534 = vrot.slane %v502, 1
        %v535 = vrot.slane %v503, 1
        %v536 = vrot.slane %v504, 1
        %v537 = vrot.slane %v505, 1
        %v538 = vrot.slane %v506, 1
        %v539 = vrot.slane %v507, 1
        %v540 = vrot.slane %v508, 1
        %v541 = vrot.slane %v509, 1
        %v542 = vrot.slane %v510, 1
        %v543 = vrot.slane %v511, 1
        %v544 = vrot.slane %v512, 1
        %v545 = vrot.slane %v513, 1
        %v546 = vrot.slane %v514, 1
        %v547 = vrot.slane %v515, 1
        %v548 = vrot.slane %v516, 1
        %v565 = vadd.f32 %v481, %v533
        %v566 = vadd.f32 %v482, %v534
        %v567 = vadd.f32 %v483, %v535
        %v568 = vadd.f32 %v484, %v536
        %v569 = vadd.f32 %v485, %v537
        %v570 = vadd.f32 %v486, %v538
        %v571 = vadd.f32 %v487, %v539
        %v572 = vadd.f32 %v488, %v540
        %v573 = vadd.f32 %v489, %v541
        %v574 = vadd.f32 %v490, %v542
        %v575 = vadd.f32 %v491, %v543
        %v576 = vadd.f32 %v492, %v544
        %v577 = vadd.f32 %v493, %v545
        %v578 = vadd.f32 %v494, %v546
        %v579 = vadd.f32 %v495, %v547
        %v580 = vadd.f32 %v496, %v548
        %v581 = vlaneseq
        %v582 = vshrl.u32 %v581, 7
        %v583 = vsub.s32 2, %v582
        %v584 = vrot.slane %v459, %v583
        %v585 = vmul.f32 %v461, %v584
        %v586 = vmul.f32 %v462, %v584
        %v587 = vmul.f32 %v463, %v584
        %v588 = vmul.f32 %v464, %v584
        %v589 = vmul.f32 %v465, %v584
        %v590 = vmul.f32 %v466, %v584
        %v591 = vmul.f32 %v467, %v584
        %v592 = vmul.f32 %v468, %v584
        %v593 = vmul.f32 %v469, %v584
        %v594 = vmul.f32 %v470, %v584
        %v595 = vmul.f32 %v471, %v584
        %v596 = vmul.f32 %v472, %v584
        %v597 = vmul.f32 %v473, %v584
        %v598 = vmul.f32 %v474, %v584
        %v599 = vmul.f32 %v475, %v584
        %v600 = vmul.f32 %v476, %v584
        %v617 = vrot.slane %v585, 2
        %v618 = vrot.slane %v586, 2
        %v619 = vrot.slane %v587, 2
        %v620 = vrot.slane %v588, 2
        %v621 = vrot.slane %v589, 2
        %v622 = vrot.slane %v590, 2
        %v623 = vrot.slane %v591, 2
        %v624 = vrot.slane %v592, 2
        %v625 = vrot.slane %v593, 2
        %v626 = vrot.slane %v594, 2
        %v627 = vrot.slane %v595, 2
        %v628 = vrot.slane %v596, 2
        %v629 = vrot.slane %v597, 2
        %v630 = vrot.slane %v598, 2
        %v631 = vrot.slane %v599, 2
        %v632 = vrot.slane %v600, 2
        %v649 = vadd.f32 %v565, %v617
        %v650 = vadd.f32 %v566, %v618
        %v651 = vadd.f32 %v567, %v619
        %v652 = vadd.f32 %v568, %v620
        %v653 = vadd.f32 %v569, %v621
        %v654 = vadd.f32 %v570, %v622
        %v655 = vadd.f32 %v571, %v623
        %v656 = vadd.f32 %v572, %v624
        %v657 = vadd.f32 %v573, %v625
        %v658 = vadd.f32 %v574, %v626
        %v659 = vadd.f32 %v575, %v627
        %v660 = vadd.f32 %v576, %v628
        %v661 = vadd.f32 %v577, %v629
        %v662 = vadd.f32 %v578, %v630
        %v663 = vadd.f32 %v579, %v631
        %v664 = vadd.f32 %v580, %v632
        %v665 = vlaneseq
        %v666 = vshrl.u32 %v665, 7
        %v667 = vsub.s32 3, %v666
        %v668 = vrot.slane %v459, %v667
        %v669 = vadd.f32 %v649, %v668
        %v670 = vadd.f32 %v650, %v668
        %v671 = vadd.f32 %v651, %v668
        %v672 = vadd.f32 %v652, %v668
        %v673 = vadd.f32 %v653, %v668
        %v674 = vadd.f32 %v654, %v668
        %v675 = vadd.f32 %v655, %v668
        %v676 = vadd.f32 %v656, %v668
        %v677 = vadd.f32 %v657, %v668
        %v678 = vadd.f32 %v658, %v668
        %v679 = vadd.f32 %v659, %v668
        %v680 = vadd.f32 %v660, %v668
        %v681 = vadd.f32 %v661, %v668
        %v682 = vadd.f32 %v662, %v668
        %v683 = vadd.f32 %v663, %v668
        %v684 = vadd.f32 %v664, %v668
        %vm685 = vcmask 1045504
        %v686 = vsel %vm685, %v669, 0.0
        %687 = vadd.xlane.f32.xlu0 %v686
        %v688 = vpop.xlane.xlu0 %687
        %v689 = vsel %vm685, %v670, 0.0
        %690 = vadd.xlane.f32.xlu0 %v689
        %v691 = vpop.xlane.xlu0 %690
        %v692 = vsel %vm685, %v671, 0.0
        %693 = vadd.xlane.f32.xlu0 %v692
        %v694 = vpop.xlane.xlu0 %693
        %v695 = vsel %vm685, %v672, 0.0
        %696 = vadd.xlane.f32.xlu0 %v695
        %v697 = vpop.xlane.xlu0 %696
        %v698 = vsel %vm685, %v673, 0.0
        %699 = vadd.xlane.f32.xlu0 %v698
        %v700 = vpop.xlane.xlu0 %699
        %v701 = vsel %vm685, %v674, 0.0
        %702 = vadd.xlane.f32.xlu0 %v701
        %v703 = vpop.xlane.xlu0 %702
        %v704 = vsel %vm685, %v675, 0.0
        %705 = vadd.xlane.f32.xlu0 %v704
        %v706 = vpop.xlane.xlu0 %705
        %v707 = vsel %vm685, %v676, 0.0
        %708 = vadd.xlane.f32.xlu0 %v707
        %v709 = vpop.xlane.xlu0 %708
        %v710 = vsel %vm685, %v677, 0.0
        %711 = vadd.xlane.f32.xlu0 %v710
        %v712 = vpop.xlane.xlu0 %711
        %v713 = vsel %vm685, %v678, 0.0
        %714 = vadd.xlane.f32.xlu0 %v713
        %v715 = vpop.xlane.xlu0 %714
        %v716 = vsel %vm685, %v679, 0.0
        %717 = vadd.xlane.f32.xlu0 %v716
        %v718 = vpop.xlane.xlu0 %717
        %v719 = vsel %vm685, %v680, 0.0
        %720 = vadd.xlane.f32.xlu0 %v719
        %v721 = vpop.xlane.xlu0 %720
        %v722 = vsel %vm685, %v681, 0.0
        %723 = vadd.xlane.f32.xlu0 %v722
        %v724 = vpop.xlane.xlu0 %723
        %v725 = vsel %vm685, %v682, 0.0
        %726 = vadd.xlane.f32.xlu0 %v725
        %v727 = vpop.xlane.xlu0 %726
        %v728 = vsel %vm685, %v683, 0.0
        %729 = vadd.xlane.f32.xlu0 %v728
        %v730 = vpop.xlane.xlu0 %729
        %v731 = vsel %vm685, %v684, 0.0
        %732 = vadd.xlane.f32.xlu0 %v731
        %v733 = vpop.xlane.xlu0 %732
        %v734 = vrcp.pop 128.0
        %v735 = vmul.f32 %v688, %v734
        %v736 = vmul.f32 %v691, %v734
        %v737 = vmul.f32 %v694, %v734
        %v738 = vmul.f32 %v697, %v734
        %v739 = vmul.f32 %v700, %v734
        %v740 = vmul.f32 %v703, %v734
        %v741 = vmul.f32 %v706, %v734
        %v742 = vmul.f32 %v709, %v734
        %v743 = vmul.f32 %v712, %v734
        %v744 = vmul.f32 %v715, %v734
        %v745 = vmul.f32 %v718, %v734
        %v746 = vmul.f32 %v721, %v734
        %v747 = vmul.f32 %v724, %v734
        %v748 = vmul.f32 %v727, %v734
        %v749 = vmul.f32 %v730, %v734
        %v750 = vmul.f32 %v733, %v734
        %v751 = vsub.f32 %v669, %v735
        %v752 = vsub.f32 %v670, %v736
        %v753 = vsub.f32 %v671, %v737
        %v754 = vsub.f32 %v672, %v738
        %v755 = vsub.f32 %v673, %v739
        %v756 = vsub.f32 %v674, %v740
        %v757 = vsub.f32 %v675, %v741
        %v758 = vsub.f32 %v676, %v742
        %v759 = vsub.f32 %v677, %v743
        %v760 = vsub.f32 %v678, %v744
        %v761 = vsub.f32 %v679, %v745
        %v762 = vsub.f32 %v680, %v746
        %v763 = vsub.f32 %v681, %v747
        %v764 = vsub.f32 %v682, %v748
        %v765 = vsub.f32 %v683, %v749
        %v766 = vsub.f32 %v684, %v750
        %v767 = vmul.f32 %v751, %v751
        %v768 = vmul.f32 %v752, %v752
        %v769 = vmul.f32 %v753, %v753
        %v770 = vmul.f32 %v754, %v754
        %v771 = vmul.f32 %v755, %v755
        %v772 = vmul.f32 %v756, %v756
        %v773 = vmul.f32 %v757, %v757
        %v774 = vmul.f32 %v758, %v758
        %v775 = vmul.f32 %v759, %v759
        %v776 = vmul.f32 %v760, %v760
        %v777 = vmul.f32 %v761, %v761
        %v778 = vmul.f32 %v762, %v762
        %v779 = vmul.f32 %v763, %v763
        %v780 = vmul.f32 %v764, %v764
        %v781 = vmul.f32 %v765, %v765
        %v782 = vmul.f32 %v766, %v766
        %v783 = vsel %vm685, %v767, 0.0
        %784 = vadd.xlane.f32.xlu0 %v783
        %v785 = vpop.xlane.xlu0 %784
        %v786 = vsel %vm685, %v768, 0.0
        %787 = vadd.xlane.f32.xlu0 %v786
        %v788 = vpop.xlane.xlu0 %787
        %v789 = vsel %vm685, %v769, 0.0
        %790 = vadd.xlane.f32.xlu0 %v789
        %v791 = vpop.xlane.xlu0 %790
        %v792 = vsel %vm685, %v770, 0.0
        %793 = vadd.xlane.f32.xlu0 %v792
        %v794 = vpop.xlane.xlu0 %793
        %v795 = vsel %vm685, %v771, 0.0
        %796 = vadd.xlane.f32.xlu0 %v795
        %v797 = vpop.xlane.xlu0 %796
        %v798 = vsel %vm685, %v772, 0.0
        %799 = vadd.xlane.f32.xlu0 %v798
        %v800 = vpop.xlane.xlu0 %799
        %v801 = vsel %vm685, %v773, 0.0
        %802 = vadd.xlane.f32.xlu0 %v801
        %v803 = vpop.xlane.xlu0 %802
        %v804 = vsel %vm685, %v774, 0.0
        %805 = vadd.xlane.f32.xlu0 %v804
        %v806 = vpop.xlane.xlu0 %805
        %v807 = vsel %vm685, %v775, 0.0
        %808 = vadd.xlane.f32.xlu0 %v807
        %v809 = vpop.xlane.xlu0 %808
        %v810 = vsel %vm685, %v776, 0.0
        %811 = vadd.xlane.f32.xlu0 %v810
        %v812 = vpop.xlane.xlu0 %811
        %v813 = vsel %vm685, %v777, 0.0
        %814 = vadd.xlane.f32.xlu0 %v813
        %v815 = vpop.xlane.xlu0 %814
        %v816 = vsel %vm685, %v778, 0.0
        %817 = vadd.xlane.f32.xlu0 %v816
        %v818 = vpop.xlane.xlu0 %817
        %v819 = vsel %vm685, %v779, 0.0
        %820 = vadd.xlane.f32.xlu0 %v819
        %v821 = vpop.xlane.xlu0 %820
        %v822 = vsel %vm685, %v780, 0.0
        %823 = vadd.xlane.f32.xlu0 %v822
        %v824 = vpop.xlane.xlu0 %823
        %v825 = vsel %vm685, %v781, 0.0
        %826 = vadd.xlane.f32.xlu0 %v825
        %v827 = vpop.xlane.xlu0 %826
        %v828 = vsel %vm685, %v782, 0.0
        %829 = vadd.xlane.f32.xlu0 %v828
        %v830 = vpop.xlane.xlu0 %829
        %v831 = vmul.f32 %v785, %v734
        %v832 = vmul.f32 %v788, %v734
        %v833 = vmul.f32 %v791, %v734
        %v834 = vmul.f32 %v794, %v734
        %v835 = vmul.f32 %v797, %v734
        %v836 = vmul.f32 %v800, %v734
        %v837 = vmul.f32 %v803, %v734
        %v838 = vmul.f32 %v806, %v734
        %v839 = vmul.f32 %v809, %v734
        %v840 = vmul.f32 %v812, %v734
        %v841 = vmul.f32 %v815, %v734
        %v842 = vmul.f32 %v818, %v734
        %v843 = vmul.f32 %v821, %v734
        %v844 = vmul.f32 %v824, %v734
        %v845 = vmul.f32 %v827, %v734
        %v846 = vmul.f32 %v830, %v734
        %v847 = vadd.f32 %v831, 1e-05
        %v848 = vadd.f32 %v832, 1e-05
        %v849 = vadd.f32 %v833, 1e-05
        %v850 = vadd.f32 %v834, 1e-05
        %v851 = vadd.f32 %v835, 1e-05
        %v852 = vadd.f32 %v836, 1e-05
        %v853 = vadd.f32 %v837, 1e-05
        %v854 = vadd.f32 %v838, 1e-05
        %v855 = vadd.f32 %v839, 1e-05
        %v856 = vadd.f32 %v840, 1e-05
        %v857 = vadd.f32 %v841, 1e-05
        %v858 = vadd.f32 %v842, 1e-05
        %v859 = vadd.f32 %v843, 1e-05
        %v860 = vadd.f32 %v844, 1e-05
        %v861 = vadd.f32 %v845, 1e-05
        %v862 = vadd.f32 %v846, 1e-05
        %v863 = vrsqrt.pop %v847
        %v864 = vrsqrt.pop %v848
        %v865 = vrsqrt.pop %v849
        %v866 = vrsqrt.pop %v850
        %v867 = vrsqrt.pop %v851
        %v868 = vrsqrt.pop %v852
        %v869 = vrsqrt.pop %v853
        %v870 = vrsqrt.pop %v854
        %v871 = vrsqrt.pop %v855
        %v872 = vrsqrt.pop %v856
        %v873 = vrsqrt.pop %v857
        %v874 = vrsqrt.pop %v858
        %v875 = vrsqrt.pop %v859
        %v876 = vrsqrt.pop %v860
        %v877 = vrsqrt.pop %v861
        %v878 = vrsqrt.pop %v862
        %v879 = vmul.f32 %v751, %v863
        %v880 = vmul.f32 %v752, %v864
        %v881 = vmul.f32 %v753, %v865
        %v882 = vmul.f32 %v754, %v866
        %v883 = vmul.f32 %v755, %v867
        %v884 = vmul.f32 %v756, %v868
        %v885 = vmul.f32 %v757, %v869
        %v886 = vmul.f32 %v758, %v870
        %v887 = vmul.f32 %v759, %v871
        %v888 = vmul.f32 %v760, %v872
        %v889 = vmul.f32 %v761, %v873
        %v890 = vmul.f32 %v762, %v874
        %v891 = vmul.f32 %v763, %v875
        %v892 = vmul.f32 %v764, %v876
        %v893 = vmul.f32 %v765, %v877
        %v894 = vmul.f32 %v766, %v878
        %v895 = vlaneseq
        %v896 = vshrl.u32 %v895, 7
        %v897 = vsub.s32 4, %v896
        %v898 = vrot.slane %v459, %v897
        %v899 = vmul.f32 %v879, %v898
        %v900 = vmul.f32 %v880, %v898
        %v901 = vmul.f32 %v881, %v898
        %v902 = vmul.f32 %v882, %v898
        %v903 = vmul.f32 %v883, %v898
        %v904 = vmul.f32 %v884, %v898
        %v905 = vmul.f32 %v885, %v898
        %v906 = vmul.f32 %v886, %v898
        %v907 = vmul.f32 %v887, %v898
        %v908 = vmul.f32 %v888, %v898
        %v909 = vmul.f32 %v889, %v898
        %v910 = vmul.f32 %v890, %v898
        %v911 = vmul.f32 %v891, %v898
        %v912 = vmul.f32 %v892, %v898
        %v913 = vmul.f32 %v893, %v898
        %v914 = vmul.f32 %v894, %v898
        %v915 = vlaneseq
        %v916 = vshrl.u32 %v915, 7
        %v917 = vsub.s32 5, %v916
        %v918 = vrot.slane %v459, %v917
        %v919 = vadd.f32 %v899, %v918
        %v920 = vadd.f32 %v900, %v918
        %v921 = vadd.f32 %v901, %v918
        %v922 = vadd.f32 %v902, %v918
        %v923 = vadd.f32 %v903, %v918
        %v924 = vadd.f32 %v904, %v918
        %v925 = vadd.f32 %v905, %v918
        %v926 = vadd.f32 %v906, %v918
        %v927 = vadd.f32 %v907, %v918
        %v928 = vadd.f32 %v908, %v918
        %v929 = vadd.f32 %v909, %v918
        %v930 = vadd.f32 %v910, %v918
        %v931 = vadd.f32 %v911, %v918
        %v932 = vadd.f32 %v912, %v918
        %v933 = vadd.f32 %v913, %v918
        %v934 = vadd.f32 %v914, %v918
        %v935 = vmax.f32 %v919, 0.0
        %v936 = vmax.f32 %v920, 0.0
        %v937 = vmax.f32 %v921, 0.0
        %v938 = vmax.f32 %v922, 0.0
        %v939 = vmax.f32 %v923, 0.0
        %v940 = vmax.f32 %v924, 0.0
        %v941 = vmax.f32 %v925, 0.0
        %v942 = vmax.f32 %v926, 0.0
        %v943 = vmax.f32 %v927, 0.0
        %v944 = vmax.f32 %v928, 0.0
        %v945 = vmax.f32 %v929, 0.0
        %v946 = vmax.f32 %v930, 0.0
        %v947 = vmax.f32 %v931, 0.0
        %v948 = vmax.f32 %v932, 0.0
        %v949 = vmax.f32 %v933, 0.0
        %v950 = vmax.f32 %v934, 0.0
        %v951 = vlaneseq
        %v952 = vshrl.u32 %v951, 7
        %v953 = vsub.s32 6, %v952
        %v954 = vrot.slane %v459, %v953
        %v955 = vmul.f32 %v935, %v954
        %v956 = vmul.f32 %v936, %v954
        %v957 = vmul.f32 %v937, %v954
        %v958 = vmul.f32 %v938, %v954
        %v959 = vmul.f32 %v939, %v954
        %v960 = vmul.f32 %v940, %v954
        %v961 = vmul.f32 %v941, %v954
        %v962 = vmul.f32 %v942, %v954
        %v963 = vmul.f32 %v943, %v954
        %v964 = vmul.f32 %v944, %v954
        %v965 = vmul.f32 %v945, %v954
        %v966 = vmul.f32 %v946, %v954
        %v967 = vmul.f32 %v947, %v954
        %v968 = vmul.f32 %v948, %v954
        %v969 = vmul.f32 %v949, %v954
        %v970 = vmul.f32 %v950, %v954
        %v971 = vlaneseq
        %v972 = vshrl.u32 %v971, 7
        %v973 = vsub.s32 7, %v972
        %v974 = vrot.slane %v459, %v973
        %v975 = vmul.f32 %v935, %v974
        %v976 = vmul.f32 %v936, %v974
        %v977 = vmul.f32 %v937, %v974
        %v978 = vmul.f32 %v938, %v974
        %v979 = vmul.f32 %v939, %v974
        %v980 = vmul.f32 %v940, %v974
        %v981 = vmul.f32 %v941, %v974
        %v982 = vmul.f32 %v942, %v974
        %v983 = vmul.f32 %v943, %v974
        %v984 = vmul.f32 %v944, %v974
        %v985 = vmul.f32 %v945, %v974
        %v986 = vmul.f32 %v946, %v974
        %v987 = vmul.f32 %v947, %v974
        %v988 = vmul.f32 %v948, %v974
        %v989 = vmul.f32 %v949, %v974
        %v990 = vmul.f32 %v950, %v974
        %v1007 = vrot.slane %v975, 1
        %v1008 = vrot.slane %v976, 1
        %v1009 = vrot.slane %v977, 1
        %v1010 = vrot.slane %v978, 1
        %v1011 = vrot.slane %v979, 1
        %v1012 = vrot.slane %v980, 1
        %v1013 = vrot.slane %v981, 1
        %v1014 = vrot.slane %v982, 1
        %v1015 = vrot.slane %v983, 1
        %v1016 = vrot.slane %v984, 1
        %v1017 = vrot.slane %v985, 1
        %v1018 = vrot.slane %v986, 1
        %v1019 = vrot.slane %v987, 1
        %v1020 = vrot.slane %v988, 1
        %v1021 = vrot.slane %v989, 1
        %v1022 = vrot.slane %v990, 1
        %v1039 = vadd.f32 %v955, %v1007
        %v1040 = vadd.f32 %v956, %v1008
        %v1041 = vadd.f32 %v957, %v1009
        %v1042 = vadd.f32 %v958, %v1010
        %v1043 = vadd.f32 %v959, %v1011
        %v1044 = vadd.f32 %v960, %v1012
        %v1045 = vadd.f32 %v961, %v1013
        %v1046 = vadd.f32 %v962, %v1014
        %v1047 = vadd.f32 %v963, %v1015
        %v1048 = vadd.f32 %v964, %v1016
        %v1049 = vadd.f32 %v965, %v1017
        %v1050 = vadd.f32 %v966, %v1018
        %v1051 = vadd.f32 %v967, %v1019
        %v1052 = vadd.f32 %v968, %v1020
        %v1053 = vadd.f32 %v969, %v1021
        %v1054 = vadd.f32 %v970, %v1022
        %v1055 = vlaneseq
        %v1056 = vshrl.u32 %v1055, 7
        %v1057 = vsub.s32 0, %v1056
        %v1058 = vrot.slane %v460, %v1057
        %v1059 = vmul.f32 %v935, %v1058
        %v1060 = vmul.f32 %v936, %v1058
        %v1061 = vmul.f32 %v937, %v1058
        %v1062 = vmul.f32 %v938, %v1058
        %v1063 = vmul.f32 %v939, %v1058
        %v1064 = vmul.f32 %v940, %v1058
        %v1065 = vmul.f32 %v941, %v1058
        %v1066 = vmul.f32 %v942, %v1058
        %v1067 = vmul.f32 %v943, %v1058
        %v1068 = vmul.f32 %v944, %v1058
        %v1069 = vmul.f32 %v945, %v1058
        %v1070 = vmul.f32 %v946, %v1058
        %v1071 = vmul.f32 %v947, %v1058
        %v1072 = vmul.f32 %v948, %v1058
        %v1073 = vmul.f32 %v949, %v1058
        %v1074 = vmul.f32 %v950, %v1058
        %v1091 = vrot.slane %v1059, 2
        %v1092 = vrot.slane %v1060, 2
        %v1093 = vrot.slane %v1061, 2
        %v1094 = vrot.slane %v1062, 2
        %v1095 = vrot.slane %v1063, 2
        %v1096 = vrot.slane %v1064, 2
        %v1097 = vrot.slane %v1065, 2
        %v1098 = vrot.slane %v1066, 2
        %v1099 = vrot.slane %v1067, 2
        %v1100 = vrot.slane %v1068, 2
        %v1101 = vrot.slane %v1069, 2
        %v1102 = vrot.slane %v1070, 2
        %v1103 = vrot.slane %v1071, 2
        %v1104 = vrot.slane %v1072, 2
        %v1105 = vrot.slane %v1073, 2
        %v1106 = vrot.slane %v1074, 2
        %v1123 = vadd.f32 %v1039, %v1091
        %v1124 = vadd.f32 %v1040, %v1092
        %v1125 = vadd.f32 %v1041, %v1093
        %v1126 = vadd.f32 %v1042, %v1094
        %v1127 = vadd.f32 %v1043, %v1095
        %v1128 = vadd.f32 %v1044, %v1096
        %v1129 = vadd.f32 %v1045, %v1097
        %v1130 = vadd.f32 %v1046, %v1098
        %v1131 = vadd.f32 %v1047, %v1099
        %v1132 = vadd.f32 %v1048, %v1100
        %v1133 = vadd.f32 %v1049, %v1101
        %v1134 = vadd.f32 %v1050, %v1102
        %v1135 = vadd.f32 %v1051, %v1103
        %v1136 = vadd.f32 %v1052, %v1104
        %v1137 = vadd.f32 %v1053, %v1105
        %v1138 = vadd.f32 %v1054, %v1106
        %v1139 = vlaneseq
        %v1140 = vshrl.u32 %v1139, 7
        %v1141 = vsub.s32 1, %v1140
        %v1142 = vrot.slane %v460, %v1141
        %v1143 = vadd.f32 %v1123, %v1142
        %v1144 = vadd.f32 %v1124, %v1142
        %v1145 = vadd.f32 %v1125, %v1142
        %v1146 = vadd.f32 %v1126, %v1142
        %v1147 = vadd.f32 %v1127, %v1142
        %v1148 = vadd.f32 %v1128, %v1142
        %v1149 = vadd.f32 %v1129, %v1142
        %v1150 = vadd.f32 %v1130, %v1142
        %v1151 = vadd.f32 %v1131, %v1142
        %v1152 = vadd.f32 %v1132, %v1142
        %v1153 = vadd.f32 %v1133, %v1142
        %v1154 = vadd.f32 %v1134, %v1142
        %v1155 = vadd.f32 %v1135, %v1142
        %v1156 = vadd.f32 %v1136, %v1142
        %v1157 = vadd.f32 %v1137, %v1142
        %v1158 = vadd.f32 %v1138, %v1142
        %vm1159 = vcmask 1043456
        %v1160 = vsel %vm1159, %v1143, 0.0
        %1161 = vadd.xlane.f32.xlu0 %v1160
        %v1162 = vpop.xlane.xlu0 %1161
        %v1163 = vsel %vm1159, %v1144, 0.0
        %1164 = vadd.xlane.f32.xlu0 %v1163
        %v1165 = vpop.xlane.xlu0 %1164
        %v1166 = vsel %vm1159, %v1145, 0.0
        %1167 = vadd.xlane.f32.xlu0 %v1166
        %v1168 = vpop.xlane.xlu0 %1167
        %v1169 = vsel %vm1159, %v1146, 0.0
        %1170 = vadd.xlane.f32.xlu0 %v1169
        %v1171 = vpop.xlane.xlu0 %1170
        %v1172 = vsel %vm1159, %v1147, 0.0
        %1173 = vadd.xlane.f32.xlu0 %v1172
        %v1174 = vpop.xlane.xlu0 %1173
        %v1175 = vsel %vm1159, %v1148, 0.0
        %1176 = vadd.xlane.f32.xlu0 %v1175
        %v1177 = vpop.xlane.xlu0 %1176
        %v1178 = vsel %vm1159, %v1149, 0.0
        %1179 = vadd.xlane.f32.xlu0 %v1178
        %v1180 = vpop.xlane.xlu0 %1179
        %v1181 = vsel %vm1159, %v1150, 0.0
        %1182 = vadd.xlane.f32.xlu0 %v1181
        %v1183 = vpop.xlane.xlu0 %1182
        %v1184 = vsel %vm1159, %v1151, 0.0
        %1185 = vadd.xlane.f32.xlu0 %v1184
        %v1186 = vpop.xlane.xlu0 %1185
        %v1187 = vsel %vm1159, %v1152, 0.0
        %1188 = vadd.xlane.f32.xlu0 %v1187
        %v1189 = vpop.xlane.xlu0 %1188
        %v1190 = vsel %vm1159, %v1153, 0.0
        %1191 = vadd.xlane.f32.xlu0 %v1190
        %v1192 = vpop.xlane.xlu0 %1191
        %v1193 = vsel %vm1159, %v1154, 0.0
        %1194 = vadd.xlane.f32.xlu0 %v1193
        %v1195 = vpop.xlane.xlu0 %1194
        %v1196 = vsel %vm1159, %v1155, 0.0
        %1197 = vadd.xlane.f32.xlu0 %v1196
        %v1198 = vpop.xlane.xlu0 %1197
        %v1199 = vsel %vm1159, %v1156, 0.0
        %1200 = vadd.xlane.f32.xlu0 %v1199
        %v1201 = vpop.xlane.xlu0 %1200
        %v1202 = vsel %vm1159, %v1157, 0.0
        %1203 = vadd.xlane.f32.xlu0 %v1202
        %v1204 = vpop.xlane.xlu0 %1203
        %v1205 = vsel %vm1159, %v1158, 0.0
        %1206 = vadd.xlane.f32.xlu0 %v1205
        %v1207 = vpop.xlane.xlu0 %1206
        %v1208 = vmul.f32 %v1162, %v734
        %v1209 = vmul.f32 %v1165, %v734
        %v1210 = vmul.f32 %v1168, %v734
        %v1211 = vmul.f32 %v1171, %v734
        %v1212 = vmul.f32 %v1174, %v734
        %v1213 = vmul.f32 %v1177, %v734
        %v1214 = vmul.f32 %v1180, %v734
        %v1215 = vmul.f32 %v1183, %v734
        %v1216 = vmul.f32 %v1186, %v734
        %v1217 = vmul.f32 %v1189, %v734
        %v1218 = vmul.f32 %v1192, %v734
        %v1219 = vmul.f32 %v1195, %v734
        %v1220 = vmul.f32 %v1198, %v734
        %v1221 = vmul.f32 %v1201, %v734
        %v1222 = vmul.f32 %v1204, %v734
        %v1223 = vmul.f32 %v1207, %v734
        %v1224 = vsub.f32 %v1143, %v1208
        %v1225 = vsub.f32 %v1144, %v1209
        %v1226 = vsub.f32 %v1145, %v1210
        %v1227 = vsub.f32 %v1146, %v1211
        %v1228 = vsub.f32 %v1147, %v1212
        %v1229 = vsub.f32 %v1148, %v1213
        %v1230 = vsub.f32 %v1149, %v1214
        %v1231 = vsub.f32 %v1150, %v1215
        %v1232 = vsub.f32 %v1151, %v1216
        %v1233 = vsub.f32 %v1152, %v1217
        %v1234 = vsub.f32 %v1153, %v1218
        %v1235 = vsub.f32 %v1154, %v1219
        %v1236 = vsub.f32 %v1155, %v1220
        %v1237 = vsub.f32 %v1156, %v1221
        %v1238 = vsub.f32 %v1157, %v1222
        %v1239 = vsub.f32 %v1158, %v1223
        %v1240 = vmul.f32 %v1224, %v1224
        %v1241 = vmul.f32 %v1225, %v1225
        %v1242 = vmul.f32 %v1226, %v1226
        %v1243 = vmul.f32 %v1227, %v1227
        %v1244 = vmul.f32 %v1228, %v1228
        %v1245 = vmul.f32 %v1229, %v1229
        %v1246 = vmul.f32 %v1230, %v1230
        %v1247 = vmul.f32 %v1231, %v1231
        %v1248 = vmul.f32 %v1232, %v1232
        %v1249 = vmul.f32 %v1233, %v1233
        %v1250 = vmul.f32 %v1234, %v1234
        %v1251 = vmul.f32 %v1235, %v1235
        %v1252 = vmul.f32 %v1236, %v1236
        %v1253 = vmul.f32 %v1237, %v1237
        %v1254 = vmul.f32 %v1238, %v1238
        %v1255 = vmul.f32 %v1239, %v1239
        %v1256 = vsel %vm1159, %v1240, 0.0
        %1257 = vadd.xlane.f32.xlu0 %v1256
        %v1258 = vpop.xlane.xlu0 %1257
        %v1259 = vsel %vm1159, %v1241, 0.0
        %1260 = vadd.xlane.f32.xlu0 %v1259
        %v1261 = vpop.xlane.xlu0 %1260
        %v1262 = vsel %vm1159, %v1242, 0.0
        %1263 = vadd.xlane.f32.xlu0 %v1262
        %v1264 = vpop.xlane.xlu0 %1263
        %v1265 = vsel %vm1159, %v1243, 0.0
        %1266 = vadd.xlane.f32.xlu0 %v1265
        %v1267 = vpop.xlane.xlu0 %1266
        %v1268 = vsel %vm1159, %v1244, 0.0
        %1269 = vadd.xlane.f32.xlu0 %v1268
        %v1270 = vpop.xlane.xlu0 %1269
        %v1271 = vsel %vm1159, %v1245, 0.0
        %1272 = vadd.xlane.f32.xlu0 %v1271
        %v1273 = vpop.xlane.xlu0 %1272
        %v1274 = vsel %vm1159, %v1246, 0.0
        %1275 = vadd.xlane.f32.xlu0 %v1274
        %v1276 = vpop.xlane.xlu0 %1275
        %v1277 = vsel %vm1159, %v1247, 0.0
        %1278 = vadd.xlane.f32.xlu0 %v1277
        %v1279 = vpop.xlane.xlu0 %1278
        %v1280 = vsel %vm1159, %v1248, 0.0
        %1281 = vadd.xlane.f32.xlu0 %v1280
        %v1282 = vpop.xlane.xlu0 %1281
        %v1283 = vsel %vm1159, %v1249, 0.0
        %1284 = vadd.xlane.f32.xlu0 %v1283
        %v1285 = vpop.xlane.xlu0 %1284
        %v1286 = vsel %vm1159, %v1250, 0.0
        %1287 = vadd.xlane.f32.xlu0 %v1286
        %v1288 = vpop.xlane.xlu0 %1287
        %v1289 = vsel %vm1159, %v1251, 0.0
        %1290 = vadd.xlane.f32.xlu0 %v1289
        %v1291 = vpop.xlane.xlu0 %1290
        %v1292 = vsel %vm1159, %v1252, 0.0
        %1293 = vadd.xlane.f32.xlu0 %v1292
        %v1294 = vpop.xlane.xlu0 %1293
        %v1295 = vsel %vm1159, %v1253, 0.0
        %1296 = vadd.xlane.f32.xlu0 %v1295
        %v1297 = vpop.xlane.xlu0 %1296
        %v1298 = vsel %vm1159, %v1254, 0.0
        %1299 = vadd.xlane.f32.xlu0 %v1298
        %v1300 = vpop.xlane.xlu0 %1299
        %v1301 = vsel %vm1159, %v1255, 0.0
        %1302 = vadd.xlane.f32.xlu0 %v1301
        %v1303 = vpop.xlane.xlu0 %1302
        %v1304 = vmul.f32 %v1258, %v734
        %v1305 = vmul.f32 %v1261, %v734
        %v1306 = vmul.f32 %v1264, %v734
        %v1307 = vmul.f32 %v1267, %v734
        %v1308 = vmul.f32 %v1270, %v734
        %v1309 = vmul.f32 %v1273, %v734
        %v1310 = vmul.f32 %v1276, %v734
        %v1311 = vmul.f32 %v1279, %v734
        %v1312 = vmul.f32 %v1282, %v734
        %v1313 = vmul.f32 %v1285, %v734
        %v1314 = vmul.f32 %v1288, %v734
        %v1315 = vmul.f32 %v1291, %v734
        %v1316 = vmul.f32 %v1294, %v734
        %v1317 = vmul.f32 %v1297, %v734
        %v1318 = vmul.f32 %v1300, %v734
        %v1319 = vmul.f32 %v1303, %v734
        %v1320 = vadd.f32 %v1304, 1e-05
        %v1321 = vadd.f32 %v1305, 1e-05
        %v1322 = vadd.f32 %v1306, 1e-05
        %v1323 = vadd.f32 %v1307, 1e-05
        %v1324 = vadd.f32 %v1308, 1e-05
        %v1325 = vadd.f32 %v1309, 1e-05
        %v1326 = vadd.f32 %v1310, 1e-05
        %v1327 = vadd.f32 %v1311, 1e-05
        %v1328 = vadd.f32 %v1312, 1e-05
        %v1329 = vadd.f32 %v1313, 1e-05
        %v1330 = vadd.f32 %v1314, 1e-05
        %v1331 = vadd.f32 %v1315, 1e-05
        %v1332 = vadd.f32 %v1316, 1e-05
        %v1333 = vadd.f32 %v1317, 1e-05
        %v1334 = vadd.f32 %v1318, 1e-05
        %v1335 = vadd.f32 %v1319, 1e-05
        %v1336 = vrsqrt.pop %v1320
        %v1337 = vrsqrt.pop %v1321
        %v1338 = vrsqrt.pop %v1322
        %v1339 = vrsqrt.pop %v1323
        %v1340 = vrsqrt.pop %v1324
        %v1341 = vrsqrt.pop %v1325
        %v1342 = vrsqrt.pop %v1326
        %v1343 = vrsqrt.pop %v1327
        %v1344 = vrsqrt.pop %v1328
        %v1345 = vrsqrt.pop %v1329
        %v1346 = vrsqrt.pop %v1330
        %v1347 = vrsqrt.pop %v1331
        %v1348 = vrsqrt.pop %v1332
        %v1349 = vrsqrt.pop %v1333
        %v1350 = vrsqrt.pop %v1334
        %v1351 = vrsqrt.pop %v1335
        %v1352 = vmul.f32 %v1224, %v1336
        %v1353 = vmul.f32 %v1225, %v1337
        %v1354 = vmul.f32 %v1226, %v1338
        %v1355 = vmul.f32 %v1227, %v1339
        %v1356 = vmul.f32 %v1228, %v1340
        %v1357 = vmul.f32 %v1229, %v1341
        %v1358 = vmul.f32 %v1230, %v1342
        %v1359 = vmul.f32 %v1231, %v1343
        %v1360 = vmul.f32 %v1232, %v1344
        %v1361 = vmul.f32 %v1233, %v1345
        %v1362 = vmul.f32 %v1234, %v1346
        %v1363 = vmul.f32 %v1235, %v1347
        %v1364 = vmul.f32 %v1236, %v1348
        %v1365 = vmul.f32 %v1237, %v1349
        %v1366 = vmul.f32 %v1238, %v1350
        %v1367 = vmul.f32 %v1239, %v1351
        %v1368 = vlaneseq
        %v1369 = vshrl.u32 %v1368, 7
        %v1370 = vsub.s32 2, %v1369
        %v1371 = vrot.slane %v460, %v1370
        %v1372 = vmul.f32 %v1352, %v1371
        %v1373 = vmul.f32 %v1353, %v1371
        %v1374 = vmul.f32 %v1354, %v1371
        %v1375 = vmul.f32 %v1355, %v1371
        %v1376 = vmul.f32 %v1356, %v1371
        %v1377 = vmul.f32 %v1357, %v1371
        %v1378 = vmul.f32 %v1358, %v1371
        %v1379 = vmul.f32 %v1359, %v1371
        %v1380 = vmul.f32 %v1360, %v1371
        %v1381 = vmul.f32 %v1361, %v1371
        %v1382 = vmul.f32 %v1362, %v1371
        %v1383 = vmul.f32 %v1363, %v1371
        %v1384 = vmul.f32 %v1364, %v1371
        %v1385 = vmul.f32 %v1365, %v1371
        %v1386 = vmul.f32 %v1366, %v1371
        %v1387 = vmul.f32 %v1367, %v1371
        %v1388 = vlaneseq
        %v1389 = vshrl.u32 %v1388, 7
        %v1390 = vsub.s32 3, %v1389
        %v1391 = vrot.slane %v460, %v1390
        %v1392 = vadd.f32 %v1372, %v1391
        %v1393 = vadd.f32 %v1373, %v1391
        %v1394 = vadd.f32 %v1374, %v1391
        %v1395 = vadd.f32 %v1375, %v1391
        %v1396 = vadd.f32 %v1376, %v1391
        %v1397 = vadd.f32 %v1377, %v1391
        %v1398 = vadd.f32 %v1378, %v1391
        %v1399 = vadd.f32 %v1379, %v1391
        %v1400 = vadd.f32 %v1380, %v1391
        %v1401 = vadd.f32 %v1381, %v1391
        %v1402 = vadd.f32 %v1382, %v1391
        %v1403 = vadd.f32 %v1383, %v1391
        %v1404 = vadd.f32 %v1384, %v1391
        %v1405 = vadd.f32 %v1385, %v1391
        %v1406 = vadd.f32 %v1386, %v1391
        %v1407 = vadd.f32 %v1387, %v1391
        %v1408 = vmax.f32 %v1392, 0.0
        %v1409 = vmax.f32 %v1393, 0.0
        %v1410 = vmax.f32 %v1394, 0.0
        %v1411 = vmax.f32 %v1395, 0.0
        %v1412 = vmax.f32 %v1396, 0.0
        %v1413 = vmax.f32 %v1397, 0.0
        %v1414 = vmax.f32 %v1398, 0.0
        %v1415 = vmax.f32 %v1399, 0.0
        %v1416 = vmax.f32 %v1400, 0.0
        %v1417 = vmax.f32 %v1401, 0.0
        %v1418 = vmax.f32 %v1402, 0.0
        %v1419 = vmax.f32 %v1403, 0.0
        %v1420 = vmax.f32 %v1404, 0.0
        %v1421 = vmax.f32 %v1405, 0.0
        %v1422 = vmax.f32 %v1406, 0.0
        %v1423 = vmax.f32 %v1407, 0.0
        %v1424 = vld [vmem:[%s248] sm:$0x1]
        %v1425 = vld [vmem:[%s248 + $0x1] sm:$0x1]
        %v1426 = vld [vmem:[%s248 + $0x2] sm:$0x1]
        %v1427 = vld [vmem:[%s248 + $0x3] sm:$0x1]
        %v1428 = vld [vmem:[%s248 + $0x4] sm:$0x1]
        %v1429 = vld [vmem:[%s248 + $0x5] sm:$0x1]
        %v1430 = vld [vmem:[%s248 + $0x6] sm:$0x1]
        %v1431 = vld [vmem:[%s248 + $0x7] sm:$0x1]
        %v1432 = vld [vmem:[%s248 + $0x8] sm:$0x1]
        %v1433 = vld [vmem:[%s248 + $0x9] sm:$0x1]
        %v1434 = vld [vmem:[%s248 + $0xa] sm:$0x1]
        %v1435 = vld [vmem:[%s248 + $0xb] sm:$0x1]
        %v1436 = vld [vmem:[%s248 + $0xc] sm:$0x1]
        %v1437 = vld [vmem:[%s248 + $0xd] sm:$0x1]
        %v1438 = vld [vmem:[%s248 + $0xe] sm:$0x1]
        %v1439 = vld [vmem:[%s248 + $0xf] sm:$0x1]
        %v1440 = vlaneseq
        %v1441 = vshrl.u32 %v1440, 7
        %v1442 = vlaneseq
        %v1443 = vshrl.u32 %v1442, 7
        %v1444 = vsub.s32 0, %v1443
        %v1445 = vrot.slane %v1424, %v1444
        %v1446 = vlaneseq
        %v1447 = vshrl.u32 %v1446, 7
        %v1448 = vsub.s32 0, %v1447
        %v1449 = vrot.slane %v1425, %v1448
        %v1450 = vlaneseq
        %v1451 = vshrl.u32 %v1450, 7
        %v1452 = vsub.s32 0, %v1451
        %v1453 = vrot.slane %v1426, %v1452
        %v1454 = vlaneseq
        %v1455 = vshrl.u32 %v1454, 7
        %v1456 = vsub.s32 0, %v1455
        %v1457 = vrot.slane %v1427, %v1456
        %v1458 = vlaneseq
        %v1459 = vshrl.u32 %v1458, 7
        %v1460 = vsub.s32 0, %v1459
        %v1461 = vrot.slane %v1428, %v1460
        %v1462 = vlaneseq
        %v1463 = vshrl.u32 %v1462, 7
        %v1464 = vsub.s32 0, %v1463
        %v1465 = vrot.slane %v1429, %v1464
        %v1466 = vlaneseq
        %v1467 = vshrl.u32 %v1466, 7
        %v1468 = vsub.s32 0, %v1467
        %v1469 = vrot.slane %v1430, %v1468
        %v1470 = vlaneseq
        %v1471 = vshrl.u32 %v1470, 7
        %v1472 = vsub.s32 0, %v1471
        %v1473 = vrot.slane %v1431, %v1472
        %v1474 = vlaneseq
        %v1475 = vshrl.u32 %v1474, 7
        %v1476 = vsub.s32 0, %v1475
        %v1477 = vrot.slane %v1432, %v1476
        %v1478 = vlaneseq
        %v1479 = vshrl.u32 %v1478, 7
        %v1480 = vsub.s32 0, %v1479
        %v1481 = vrot.slane %v1433, %v1480
        %v1482 = vlaneseq
        %v1483 = vshrl.u32 %v1482, 7
        %v1484 = vsub.s32 0, %v1483
        %v1485 = vrot.slane %v1434, %v1484
        %v1486 = vlaneseq
        %v1487 = vshrl.u32 %v1486, 7
        %v1488 = vsub.s32 0, %v1487
        %v1489 = vrot.slane %v1435, %v1488
        %v1490 = vlaneseq
        %v1491 = vshrl.u32 %v1490, 7
        %v1492 = vsub.s32 0, %v1491
        %v1493 = vrot.slane %v1436, %v1492
        %v1494 = vlaneseq
        %v1495 = vshrl.u32 %v1494, 7
        %v1496 = vsub.s32 0, %v1495
        %v1497 = vrot.slane %v1437, %v1496
        %v1498 = vlaneseq
        %v1499 = vshrl.u32 %v1498, 7
        %v1500 = vsub.s32 0, %v1499
        %v1501 = vrot.slane %v1438, %v1500
        %v1502 = vlaneseq
        %v1503 = vshrl.u32 %v1502, 7
        %v1504 = vsub.s32 0, %v1503
        %v1505 = vrot.slane %v1439, %v1504
        %vm1506 = vcmp.ge.s32.totalorder %v1441, %v1445
        %vm1507 = vcmp.ge.s32.totalorder %v1441, %v1449
        %vm1508 = vcmp.ge.s32.totalorder %v1441, %v1453
        %vm1509 = vcmp.ge.s32.totalorder %v1441, %v1457
        %vm1510 = vcmp.ge.s32.totalorder %v1441, %v1461
        %vm1511 = vcmp.ge.s32.totalorder %v1441, %v1465
        %vm1512 = vcmp.ge.s32.totalorder %v1441, %v1469
        %vm1513 = vcmp.ge.s32.totalorder %v1441, %v1473
        %vm1514 = vcmp.ge.s32.totalorder %v1441, %v1477
        %vm1515 = vcmp.ge.s32.totalorder %v1441, %v1481
        %vm1516 = vcmp.ge.s32.totalorder %v1441, %v1485
        %vm1517 = vcmp.ge.s32.totalorder %v1441, %v1489
        %vm1518 = vcmp.ge.s32.totalorder %v1441, %v1493
        %vm1519 = vcmp.ge.s32.totalorder %v1441, %v1497
        %vm1520 = vcmp.ge.s32.totalorder %v1441, %v1501
        %vm1521 = vcmp.ge.s32.totalorder %v1441, %v1505
        %vm1522 = vcmp.le.s32.totalorder %v1441, %v1445
        %vm1523 = vcmp.le.s32.totalorder %v1441, %v1449
        %vm1524 = vcmp.le.s32.totalorder %v1441, %v1453
        %vm1525 = vcmp.le.s32.totalorder %v1441, %v1457
        %vm1526 = vcmp.le.s32.totalorder %v1441, %v1461
        %vm1527 = vcmp.le.s32.totalorder %v1441, %v1465
        %vm1528 = vcmp.le.s32.totalorder %v1441, %v1469
        %vm1529 = vcmp.le.s32.totalorder %v1441, %v1473
        %vm1530 = vcmp.le.s32.totalorder %v1441, %v1477
        %vm1531 = vcmp.le.s32.totalorder %v1441, %v1481
        %vm1532 = vcmp.le.s32.totalorder %v1441, %v1485
        %vm1533 = vcmp.le.s32.totalorder %v1441, %v1489
        %vm1534 = vcmp.le.s32.totalorder %v1441, %v1493
        %vm1535 = vcmp.le.s32.totalorder %v1441, %v1497
        %vm1536 = vcmp.le.s32.totalorder %v1441, %v1501
        %vm1537 = vcmp.le.s32.totalorder %v1441, %v1505
        %v1538 = vsel %vm1522, 1, 0
        %v1539 = vsel %vm1523, 1, 0
        %v1540 = vsel %vm1524, 1, 0
        %v1541 = vsel %vm1525, 1, 0
        %v1542 = vsel %vm1526, 1, 0
        %v1543 = vsel %vm1527, 1, 0
        %v1544 = vsel %vm1528, 1, 0
        %v1545 = vsel %vm1529, 1, 0
        %v1546 = vsel %vm1530, 1, 0
        %v1547 = vsel %vm1531, 1, 0
        %v1548 = vsel %vm1532, 1, 0
        %v1549 = vsel %vm1533, 1, 0
        %v1550 = vsel %vm1534, 1, 0
        %v1551 = vsel %vm1535, 1, 0
        %v1552 = vsel %vm1536, 1, 0
        %v1553 = vsel %vm1537, 1, 0
        %1554 = vrot.lane.b32.xlu0 %v1538, 127
        %v1555 = vpop.permute.xlu0 %1554
        %1556 = vrot.lane.b32.xlu0 %v1539, 127
        %v1557 = vpop.permute.xlu0 %1556
        %1558 = vrot.lane.b32.xlu0 %v1540, 127
        %v1559 = vpop.permute.xlu0 %1558
        %1560 = vrot.lane.b32.xlu0 %v1541, 127
        %v1561 = vpop.permute.xlu0 %1560
        %1562 = vrot.lane.b32.xlu0 %v1542, 127
        %v1563 = vpop.permute.xlu0 %1562
        %1564 = vrot.lane.b32.xlu0 %v1543, 127
        %v1565 = vpop.permute.xlu0 %1564
        %1566 = vrot.lane.b32.xlu0 %v1544, 127
        %v1567 = vpop.permute.xlu0 %1566
        %1568 = vrot.lane.b32.xlu0 %v1545, 127
        %v1569 = vpop.permute.xlu0 %1568
        %1570 = vrot.lane.b32.xlu0 %v1546, 127
        %v1571 = vpop.permute.xlu0 %1570
        %1572 = vrot.lane.b32.xlu0 %v1547, 127
        %v1573 = vpop.permute.xlu0 %1572
        %1574 = vrot.lane.b32.xlu0 %v1548, 127
        %v1575 = vpop.permute.xlu0 %1574
        %1576 = vrot.lane.b32.xlu0 %v1549, 127
        %v1577 = vpop.permute.xlu0 %1576
        %1578 = vrot.lane.b32.xlu0 %v1550, 127
        %v1579 = vpop.permute.xlu0 %1578
        %1580 = vrot.lane.b32.xlu0 %v1551, 127
        %v1581 = vpop.permute.xlu0 %1580
        %1582 = vrot.lane.b32.xlu0 %v1552, 127
        %v1583 = vpop.permute.xlu0 %1582
        %1584 = vrot.lane.b32.xlu0 %v1553, 127
        %v1585 = vpop.permute.xlu0 %1584
        %vm1586 = vcmp.ne.s32.totalorder %v1555, 0
        %vm1587 = vcmp.ne.s32.totalorder %v1557, 0
        %vm1588 = vcmp.ne.s32.totalorder %v1559, 0
        %vm1589 = vcmp.ne.s32.totalorder %v1561, 0
        %vm1590 = vcmp.ne.s32.totalorder %v1563, 0
        %vm1591 = vcmp.ne.s32.totalorder %v1565, 0
        %vm1592 = vcmp.ne.s32.totalorder %v1567, 0
        %vm1593 = vcmp.ne.s32.totalorder %v1569, 0
        %vm1594 = vcmp.ne.s32.totalorder %v1571, 0
        %vm1595 = vcmp.ne.s32.totalorder %v1573, 0
        %vm1596 = vcmp.ne.s32.totalorder %v1575, 0
        %vm1597 = vcmp.ne.s32.totalorder %v1577, 0
        %vm1598 = vcmp.ne.s32.totalorder %v1579, 0
        %vm1599 = vcmp.ne.s32.totalorder %v1581, 0
        %vm1600 = vcmp.ne.s32.totalorder %v1583, 0
        %vm1601 = vcmp.ne.s32.totalorder %v1585, 0
        %vm1602 = vmand %vm1506, %vm1586
        %vm1603 = vmand %vm1507, %vm1587
        %vm1604 = vmand %vm1508, %vm1588
        %vm1605 = vmand %vm1509, %vm1589
        %vm1606 = vmand %vm1510, %vm1590
        %vm1607 = vmand %vm1511, %vm1591
        %vm1608 = vmand %vm1512, %vm1592
        %vm1609 = vmand %vm1513, %vm1593
        %vm1610 = vmand %vm1514, %vm1594
        %vm1611 = vmand %vm1515, %vm1595
        %vm1612 = vmand %vm1516, %vm1596
        %vm1613 = vmand %vm1517, %vm1597
        %vm1614 = vmand %vm1518, %vm1598
        %vm1615 = vmand %vm1519, %vm1599
        %vm1616 = vmand %vm1520, %vm1600
        %vm1617 = vmand %vm1521, %vm1601
        %v1618 = vsel %vm1602, 1, 0
        %v1619 = vsel %vm1603, 1, 0
        %v1620 = vsel %vm1604, 1, 0
        %v1621 = vsel %vm1605, 1, 0
        %v1622 = vsel %vm1606, 1, 0
        %v1623 = vsel %vm1607, 1, 0
        %v1624 = vsel %vm1608, 1, 0
        %v1625 = vsel %vm1609, 1, 0
        %v1626 = vsel %vm1610, 1, 0
        %v1627 = vsel %vm1611, 1, 0
        %v1628 = vsel %vm1612, 1, 0
        %v1629 = vsel %vm1613, 1, 0
        %v1630 = vsel %vm1614, 1, 0
        %v1631 = vsel %vm1615, 1, 0
        %v1632 = vsel %vm1616, 1, 0
        %v1633 = vsel %vm1617, 1, 0
        %1634 = vset.pattern.permute.xlu0 0
        %1635 = vperm.xlu0 %1634, %v1618
        %v1636 = vpop.permute.xlu0 %1635
        %1637 = vset.pattern.permute.xlu0 0
        %1638 = vperm.xlu0 %1637, %v1619
        %v1639 = vpop.permute.xlu0 %1638
        %1640 = vset.pattern.permute.xlu0 0
        %1641 = vperm.xlu0 %1640, %v1620
        %v1642 = vpop.permute.xlu0 %1641
        %1643 = vset.pattern.permute.xlu0 0
        %1644 = vperm.xlu0 %1643, %v1621
        %v1645 = vpop.permute.xlu0 %1644
        %1646 = vset.pattern.permute.xlu0 0
        %1647 = vperm.xlu0 %1646, %v1622
        %v1648 = vpop.permute.xlu0 %1647
        %1649 = vset.pattern.permute.xlu0 0
        %1650 = vperm.xlu0 %1649, %v1623
        %v1651 = vpop.permute.xlu0 %1650
        %1652 = vset.pattern.permute.xlu0 0
        %1653 = vperm.xlu0 %1652, %v1624
        %v1654 = vpop.permute.xlu0 %1653
        %1655 = vset.pattern.permute.xlu0 0
        %1656 = vperm.xlu0 %1655, %v1625
        %v1657 = vpop.permute.xlu0 %1656
        %1658 = vset.pattern.permute.xlu0 0
        %1659 = vperm.xlu0 %1658, %v1626
        %v1660 = vpop.permute.xlu0 %1659
        %1661 = vset.pattern.permute.xlu0 0
        %1662 = vperm.xlu0 %1661, %v1627
        %v1663 = vpop.permute.xlu0 %1662
        %1664 = vset.pattern.permute.xlu0 0
        %1665 = vperm.xlu0 %1664, %v1628
        %v1666 = vpop.permute.xlu0 %1665
        %1667 = vset.pattern.permute.xlu0 0
        %1668 = vperm.xlu0 %1667, %v1629
        %v1669 = vpop.permute.xlu0 %1668
        %1670 = vset.pattern.permute.xlu0 0
        %1671 = vperm.xlu0 %1670, %v1630
        %v1672 = vpop.permute.xlu0 %1671
        %1673 = vset.pattern.permute.xlu0 0
        %1674 = vperm.xlu0 %1673, %v1631
        %v1675 = vpop.permute.xlu0 %1674
        %1676 = vset.pattern.permute.xlu0 0
        %1677 = vperm.xlu0 %1676, %v1632
        %v1678 = vpop.permute.xlu0 %1677
        %1679 = vset.pattern.permute.xlu0 0
        %1680 = vperm.xlu0 %1679, %v1633
        %v1681 = vpop.permute.xlu0 %1680
        %vm1682 = vcmp.eq.s32.totalorder %v1636, 1
        %vm1683 = vcmp.eq.s32.totalorder %v1639, 1
        %vm1684 = vcmp.eq.s32.totalorder %v1642, 1
        %vm1685 = vcmp.eq.s32.totalorder %v1645, 1
        %vm1686 = vcmp.eq.s32.totalorder %v1648, 1
        %vm1687 = vcmp.eq.s32.totalorder %v1651, 1
        %vm1688 = vcmp.eq.s32.totalorder %v1654, 1
        %vm1689 = vcmp.eq.s32.totalorder %v1657, 1
        %vm1690 = vcmp.eq.s32.totalorder %v1660, 1
        %vm1691 = vcmp.eq.s32.totalorder %v1663, 1
        %vm1692 = vcmp.eq.s32.totalorder %v1666, 1
        %vm1693 = vcmp.eq.s32.totalorder %v1669, 1
        %vm1694 = vcmp.eq.s32.totalorder %v1672, 1
        %vm1695 = vcmp.eq.s32.totalorder %v1675, 1
        %vm1696 = vcmp.eq.s32.totalorder %v1678, 1
        %vm1697 = vcmp.eq.s32.totalorder %v1681, 1
        %v1698 = vsel %vm1682, %v1408, -inf
        %v1699 = vsel %vm1683, %v1409, -inf
        %v1700 = vsel %vm1684, %v1410, -inf
        %v1701 = vsel %vm1685, %v1411, -inf
        %v1702 = vsel %vm1686, %v1412, -inf
        %v1703 = vsel %vm1687, %v1413, -inf
        %v1704 = vsel %vm1688, %v1414, -inf
        %v1705 = vsel %vm1689, %v1415, -inf
        %v1706 = vsel %vm1690, %v1416, -inf
        %v1707 = vsel %vm1691, %v1417, -inf
        %v1708 = vsel %vm1692, %v1418, -inf
        %v1709 = vsel %vm1693, %v1419, -inf
        %v1710 = vsel %vm1694, %v1420, -inf
        %v1711 = vsel %vm1695, %v1421, -inf
        %v1712 = vsel %vm1696, %v1422, -inf
        %v1713 = vsel %vm1697, %v1423, -inf
        %v1714 = vsel %vm1159, %v1698, -inf
        %v1715 = vrot.slane %v1714, 4
        %v1716 = vmax.f32 %v1714, %v1715
        %v1717 = vrot.slane %v1716, 2
        %v1718 = vmax.f32 %v1716, %v1717
        %v1719 = vrot.slane %v1718, 1
        %v1720 = vmax.f32 %v1718, %v1719
        %v1721 = vsel %vm1159, %v1699, -inf
        %v1722 = vrot.slane %v1721, 4
        %v1723 = vmax.f32 %v1721, %v1722
        %v1724 = vrot.slane %v1723, 2
        %v1725 = vmax.f32 %v1723, %v1724
        %v1726 = vrot.slane %v1725, 1
        %v1727 = vmax.f32 %v1725, %v1726
        %v1728 = vsel %vm1159, %v1700, -inf
        %v1729 = vrot.slane %v1728, 4
        %v1730 = vmax.f32 %v1728, %v1729
        %v1731 = vrot.slane %v1730, 2
        %v1732 = vmax.f32 %v1730, %v1731
        %v1733 = vrot.slane %v1732, 1
        %v1734 = vmax.f32 %v1732, %v1733
        %v1735 = vsel %vm1159, %v1701, -inf
        %v1736 = vrot.slane %v1735, 4
        %v1737 = vmax.f32 %v1735, %v1736
        %v1738 = vrot.slane %v1737, 2
        %v1739 = vmax.f32 %v1737, %v1738
        %v1740 = vrot.slane %v1739, 1
        %v1741 = vmax.f32 %v1739, %v1740
        %v1742 = vsel %vm1159, %v1702, -inf
        %v1743 = vrot.slane %v1742, 4
        %v1744 = vmax.f32 %v1742, %v1743
        %v1745 = vrot.slane %v1744, 2
        %v1746 = vmax.f32 %v1744, %v1745
        %v1747 = vrot.slane %v1746, 1
        %v1748 = vmax.f32 %v1746, %v1747
        %v1749 = vsel %vm1159, %v1703, -inf
        %v1750 = vrot.slane %v1749, 4
        %v1751 = vmax.f32 %v1749, %v1750
        %v1752 = vrot.slane %v1751, 2
        %v1753 = vmax.f32 %v1751, %v1752
        %v1754 = vrot.slane %v1753, 1
        %v1755 = vmax.f32 %v1753, %v1754
        %v1756 = vsel %vm1159, %v1704, -inf
        %v1757 = vrot.slane %v1756, 4
        %v1758 = vmax.f32 %v1756, %v1757
        %v1759 = vrot.slane %v1758, 2
        %v1760 = vmax.f32 %v1758, %v1759
        %v1761 = vrot.slane %v1760, 1
        %v1762 = vmax.f32 %v1760, %v1761
        %v1763 = vsel %vm1159, %v1705, -inf
        %v1764 = vrot.slane %v1763, 4
        %v1765 = vmax.f32 %v1763, %v1764
        %v1766 = vrot.slane %v1765, 2
        %v1767 = vmax.f32 %v1765, %v1766
        %v1768 = vrot.slane %v1767, 1
        %v1769 = vmax.f32 %v1767, %v1768
        %v1770 = vsel %vm1159, %v1706, -inf
        %v1771 = vrot.slane %v1770, 4
        %v1772 = vmax.f32 %v1770, %v1771
        %v1773 = vrot.slane %v1772, 2
        %v1774 = vmax.f32 %v1772, %v1773
        %v1775 = vrot.slane %v1774, 1
        %v1776 = vmax.f32 %v1774, %v1775
        %v1777 = vsel %vm1159, %v1707, -inf
        %v1778 = vrot.slane %v1777, 4
        %v1779 = vmax.f32 %v1777, %v1778
        %v1780 = vrot.slane %v1779, 2
        %v1781 = vmax.f32 %v1779, %v1780
        %v1782 = vrot.slane %v1781, 1
        %v1783 = vmax.f32 %v1781, %v1782
        %v1784 = vsel %vm1159, %v1708, -inf
        %v1785 = vrot.slane %v1784, 4
        %v1786 = vmax.f32 %v1784, %v1785
        %v1787 = vrot.slane %v1786, 2
        %v1788 = vmax.f32 %v1786, %v1787
        %v1789 = vrot.slane %v1788, 1
        %v1790 = vmax.f32 %v1788, %v1789
        %v1791 = vsel %vm1159, %v1709, -inf
        %v1792 = vrot.slane %v1791, 4
        %v1793 = vmax.f32 %v1791, %v1792
        %v1794 = vrot.slane %v1793, 2
        %v1795 = vmax.f32 %v1793, %v1794
        %v1796 = vrot.slane %v1795, 1
        %v1797 = vmax.f32 %v1795, %v1796
        %v1798 = vsel %vm1159, %v1710, -inf
        %v1799 = vrot.slane %v1798, 4
        %v1800 = vmax.f32 %v1798, %v1799
        %v1801 = vrot.slane %v1800, 2
        %v1802 = vmax.f32 %v1800, %v1801
        %v1803 = vrot.slane %v1802, 1
        %v1804 = vmax.f32 %v1802, %v1803
        %v1805 = vsel %vm1159, %v1711, -inf
        %v1806 = vrot.slane %v1805, 4
        %v1807 = vmax.f32 %v1805, %v1806
        %v1808 = vrot.slane %v1807, 2
        %v1809 = vmax.f32 %v1807, %v1808
        %v1810 = vrot.slane %v1809, 1
        %v1811 = vmax.f32 %v1809, %v1810
        %v1812 = vsel %vm1159, %v1712, -inf
        %v1813 = vrot.slane %v1812, 4
        %v1814 = vmax.f32 %v1812, %v1813
        %v1815 = vrot.slane %v1814, 2
        %v1816 = vmax.f32 %v1814, %v1815
        %v1817 = vrot.slane %v1816, 1
        %v1818 = vmax.f32 %v1816, %v1817
        %v1819 = vsel %vm1159, %v1713, -inf
        %v1820 = vrot.slane %v1819, 4
        %v1821 = vmax.f32 %v1819, %v1820
        %v1822 = vrot.slane %v1821, 2
        %v1823 = vmax.f32 %v1821, %v1822
        %v1824 = vrot.slane %v1823, 1
        %v1825 = vmax.f32 %v1823, %v1824
        %vm1842 = vcmask 1041409
        %v1843 = vsel %vm1842, %v1727, %v1720
        %vm1844 = vcmask 1042434
        %v1845 = vsel %vm1844, %v1734, %v1843
        %vm1846 = vcmask 1043459
        %v1847 = vsel %vm1846, %v1741, %v1845
        %vm1848 = vcmask 1044484
        %v1849 = vsel %vm1848, %v1748, %v1847
        %vm1850 = vcmask 1045509
        %v1851 = vsel %vm1850, %v1755, %v1849
        %vm1852 = vcmask 1046534
        %v1853 = vsel %vm1852, %v1762, %v1851
        %vm1854 = vcmask 1047559
        %v1855 = vsel %vm1854, %v1769, %v1853
        %v1856 = vsel %vm1842, %v1783, %v1776
        %v1857 = vsel %vm1844, %v1790, %v1856
        %v1858 = vsel %vm1846, %v1797, %v1857
        %v1859 = vsel %vm1848, %v1804, %v1858
        %v1860 = vsel %vm1850, %v1811, %v1859
        %v1861 = vsel %vm1852, %v1818, %v1860
        %v1862 = vsel %vm1854, %v1825, %v1861
        %1865 = vst [vmem:[%s235] sm:$0xff] %v1855
        %1866 = vst [vmem:[%s235 + $0x8] sm:$0xff] %v1862
        %s1867 = sand.u32 %s143, 1
        %s1868 = scalar_lea.sflag [#allocation6], %s1867
        %s1869 = sand.u32 %s143, 1
        %s1870 = smul.addr %s1869, 16
        %s1871 = scalar_lea.vmem [#allocation5], %s1870
        // Predicated region
        $region37: #{adaptive_temporal_conv.3} parent=35 // pred_check
          %p1872 = pneg %p153
        $region38: #{adaptive_temporal_conv.3} parent=35 // pred_check_branch
          %1874 = sbr.rel (%p1872) target = $region40
        $region39: #{adaptive_temporal_conv.3} parent=35 // pred_region
          %s1875 = smul.u32 2, %s30
          %s1877 = ssub.s32 256, 256
          %1878 = vsyncadd %s1868, %s1877
          %s1879 = smul.addr %s29, 2
          %s1880 = sadd.s32 %s1875, %s1879
          %s1881 = smul.addr %s1880, 128
          %s1882 = scalar_lea.hbm %s5, %s1881
          %s1883 = sshll.u32 %s1871, 4
          %s1884 = int_to_ptr.vmem [resolvable:$true] %s1883
          %1889 = dma.vmem_to_hbm [thread:$0]  %s1884, 256, %s1882, %s1868, 128, 128, 8
        $region40: #{adaptive_temporal_conv.3} parent=35 // pred_fallthru
          _
      $region36: #{adaptive_temporal_conv.3} parent=5 // pred_fallthru
        _
      %p1890 = scmp.le.s32.totalorder 2, %s20
      // Predicated region
      $region41: #{adaptive_temporal_conv.3} parent=5 // pred_check
        %p1891 = pneg %p1890
      $region42: #{adaptive_temporal_conv.3} parent=5 // pred_check_branch
        %1893 = sbr.rel (%p1891) target = $region44
      $region43: #{adaptive_temporal_conv.3} parent=5 // pred_region
        %s1894 = ssub.s32 %s20, 2
        // Predicated region
        $region45: #{adaptive_temporal_conv.3} parent=43 // pred_check
          %p1895 = pneg %p159
        $region46: #{adaptive_temporal_conv.3} parent=43 // pred_check_branch
          %1897 = sbr.rel (%p1895) target = $region48
        $region47: #{adaptive_temporal_conv.3} parent=43 // pred_region
          %s1898 = sand.u32 %s144, 1
          %s1899 = scalar_lea.sflag [#allocation6], %s1898
          %s1900 = sand.u32 %s144, 1
          %s1901 = smul.addr %s1900, 16
          %s1902 = scalar_lea.vmem [#allocation5], %s1901
          %1903 = dma.done %s1899, 256
        $region48: #{adaptive_temporal_conv.3} parent=43 // pred_fallthru
          _
      $region44: #{adaptive_temporal_conv.3} parent=5 // pred_fallthru
        _
    $region6: #{adaptive_temporal_conv.3} parent=1 // loop_footer
      %s24 = sadd.s32 1, %s20
    $region7: #{adaptive_temporal_conv.3} parent=1 // loop_footer_branch
      %19 = sbr.rel target = $region3
    $region8: #{adaptive_temporal_conv.3} parent=1 // loop_exit
      _
    %1904 = vsyncpa [#allocation6], 1
    %s1905 = scalar_lea.sflag [#allocation6], 1
    %1906 = vsyncpa %s1905, 1

</llo_original>
